<compile_context>
chip_gen: v5e
topology: v5e:2x2
jax: 0.10.0
libtpu: 0.0.40
codegen_flags: <defaults>
</compile_context>

<pallas_src>
import functools

import jax
import jax.numpy as jnp
from jax import lax
from jax.experimental import pallas as pl
from jax.experimental.pallas import tpu as pltpu

LN_EPS = 1e-5
LANES = 128


def _rup(n, m):
    return ((n + m - 1) // m) * m


def _rup_lanes(n):
    return max(LANES, _rup(n, LANES))


# ---------------------------------------------------------------------------
# Fused kernel
# ---------------------------------------------------------------------------
def _layernorm_onepass(h, gamma, beta, inv_d):
    # h's padded lanes are exactly zero, so full-width lane sums equal the
    # real-feature sums; divide by the *real* feature count (inv_d).
    # gamma/beta padded lanes are zero, so padded lanes come out zero again.
    # (One-pass var = E[h^2]-E[h]^2 is required here: a two-pass centered sum
    #  would pick up mean^2 contributions from the zero-padded lanes.)
    s = jnp.sum(h, axis=-1, keepdims=True)
    sq = jnp.sum(h * h, axis=-1, keepdims=True)
    mean = s * inv_d
    var = sq * inv_d - mean * mean
    scale = gamma * lax.rsqrt(var + LN_EPS)      # gamma folded into the scale
    return (h - mean) * scale + beta


def fused_mlp_kernel(structure, *refs):
    # refs = (x_ref, <per-layer param refs...>, o_ref)
    x_ref, o_ref = refs[0], refs[-1]
    prefs = refs[1:-1]

    h = x_ref[...].astype(jnp.float32)
    idx = 0
    for kind, d_real in structure:           # static; unrolled at trace time
        if kind == "res_skip":
            wcat_ref, b_ref, g_ref, be_ref = prefs[idx:idx + 4]
            idx += 4
            dpad = wcat_ref.shape[1] // 2
            # single MXU push for [dense | skip]; split halves immediately
            y = jnp.dot(h, wcat_ref[...], preferred_element_type=jnp.float32)
            y_dense = y[:, :dpad] + b_ref[...]
            y_skip = y[:, dpad:]
            hh = _layernorm_onepass(y_dense, g_ref[...], be_ref[...],
                                    1.0 / d_real)
            out = hh + y_skip
            h = out * jax.nn.sigmoid(out)                       # SiLU
        elif kind == "res_id":
            w_ref, b_ref, g_ref, be_ref = prefs[idx:idx + 4]
            idx += 4
            hh = jnp.dot(h, w_ref[...],
                         preferred_element_type=jnp.float32) + b_ref[...]
            hh = _layernorm_onepass(hh, g_ref[...], be_ref[...], 1.0 / d_real)
            out = hh + h
            h = out * jax.nn.sigmoid(out)                       # SiLU
        else:  # "linear"
            w_ref, b_ref = prefs[idx:idx + 2]
            idx += 2
            h = jnp.dot(h, w_ref[...],
                        preferred_element_type=jnp.float32) + b_ref[...]
    o_ref[...] = h.astype(o_ref.dtype)


# ---------------------------------------------------------------------------
# Parameter packing / wrapper
# ---------------------------------------------------------------------------
def _full_spec(shape):
    return pl.BlockSpec(shape, lambda i: (0,) * len(shape))


def _pad2(a, rows, cols):
    return jnp.pad(a, ((0, rows - a.shape[0]), (0, cols - a.shape[1])))


def _pack_layers(layers):
    """Pad hidden dims to 128 lanes; keep streamed in/out dims at real width.

    Returns (structure, inputs, specs, in_width, out_width).
    """
    n_layers = len(layers)
    structure, inputs, specs = [], [], []
    in_width = None
    out_width = None
    for li, (kind, p) in enumerate(layers):
        din, dout = p["w"].shape
        has_skip = (kind == "resblock") and ("skip_w" in p)
        is_first = li == 0
        is_last = li == n_layers - 1

        if is_first:
            # streamed input stays at real width, unless the first layer is an
            # identity-skip ResBlock (then h must already match the padded
            # hidden width so hh + h broadcasts).
            din_p = din if (kind != "resblock" or has_skip) else _rup_lanes(din)
            in_width = din_p
        else:
            din_p = _rup_lanes(din)

        if kind == "resblock":
            dout_p = _rup_lanes(dout)
        else:
            dout_p = dout if is_last else _rup_lanes(dout)
        if is_last:
            out_width = dout_p

        w = _pad2(p["w"], din_p, dout_p)
        b = _pad2(p["b"], 1, dout_p)
        if kind == "resblock":
            g = _pad2(p["gamma"], 1, dout_p)
            be = _pad2(p["beta"], 1, dout_p)
            if has_skip:
                wcat = jnp.concatenate(
                    [w, _pad2(p["skip_w"], din_p, dout_p)], axis=1)
                structure.append(("res_skip", dout))
                inputs += [wcat, b, g, be]
                specs += [_full_spec((din_p, 2 * dout_p)),
                          _full_spec((1, dout_p)),
                          _full_spec((1, dout_p)),
                          _full_spec((1, dout_p))]
            else:
                structure.append(("res_id", dout))
                inputs += [w, b, g, be]
                specs += [_full_spec((din_p, dout_p)),
                          _full_spec((1, dout_p)),
                          _full_spec((1, dout_p)),
                          _full_spec((1, dout_p))]
        else:
            structure.append(("linear", dout))
            inputs += [w, b]
            specs += [_full_spec((din_p, dout_p)), _full_spec((1, dout_p))]
    return tuple(structure), inputs, specs, in_width, out_width


def mlp_forward(x, layers, *, max_tile=1024):
    N, din = x.shape
    dout_real = layers[-1][1]["w"].shape[1]
    structure, param_inputs, param_specs, in_w, out_w = _pack_layers(layers)

    # Grid: always >= 2 steps (software pipeline / DMA overlap) and an even
    # count (both v7x TensorCores get equal work); tile rounded up to 8
    # sublanes so padding waste is bounded by < 8 * n_tiles rows.
    n_tiles = max(2, pl.cdiv(N, max_tile))
    if n_tiles % 2:
        n_tiles += 1
    tile = _rup(pl.cdiv(N, n_tiles), 8)
    n_pad = n_tiles * tile

    x_p = jnp.pad(x, ((0, n_pad - N), (0, in_w - din)))

    itemsize = jnp.dtype(x.dtype).itemsize
    param_bytes = int(sum(a.size * a.dtype.itemsize for a in param_inputs))

    # Cost estimate (advisory, real dims).
    flops = 0
    transcendentals = 0
    for kind, p in layers:
        di, do = p["w"].shape
        flops += 2 * n_pad * di * do
        if kind == "resblock":
            if "skip_w" in p:
                flops += 2 * n_pad * di * do
            transcendentals += n_pad * do          # sigmoid inside SiLU
    bytes_accessed = int(x_p.size * itemsize + n_pad * out_w * itemsize
                         + param_bytes)
    cost = pl.CostEstimate(flops=int(flops),
                           transcendentals=int(transcendentals),
                           bytes_accessed=bytes_accessed)

    # VMEM budget from the actual footprint (double-buffered I/O tiles,
    # resident params x2, generous headroom for per-layer intermediates).
    max_width = max(int(a.shape[-1]) for a in param_inputs)
    act_bytes = tile * max_width * 4
    est = (2 * param_bytes
           + 2 * tile * (in_w + out_w) * itemsize
           + 24 * act_bytes
           + (4 << 20))
    vmem_limit = int(min(96 << 20, max(16 << 20, est)))

    out = pl.pallas_call(
        functools.partial(fused_mlp_kernel, structure),
        out_shape=jax.ShapeDtypeStruct((n_pad, out_w), x.dtype),
        grid_spec=pltpu.PrefetchScalarGridSpec(
            num_scalar_prefetch=0,
            grid=(n_tiles,),
            in_specs=[pl.BlockSpec((tile, in_w), lambda i: (i, 0))]
                     + param_specs,
            out_specs=pl.BlockSpec((tile, out_w), lambda i: (i, 0)),
        ),
        compiler_params=pltpu.CompilerParams(
            dimension_semantics=("parallel",),
            vmem_limit_bytes=vmem_limit,
        ),
        cost_estimate=cost,
    )(x_p, *param_inputs)

    return out[:N, :dout_real]


# ---------------------------------------------------------------------------
# Parameter init (deterministic, synthetic)
# ---------------------------------------------------------------------------
def init_mlp(key, dim_in, dim_out, dim_hidden, num_layers, bias=True):
    layers = []
    for l in range(num_layers):
        key, kw, kb, ks = jax.random.split(key, 4)
        if l != num_layers - 1:
            d_in = dim_in if l == 0 else dim_hidden
            d_out = dim_hidden
            p = {
                "w": jax.random.normal(kw, (d_in, d_out), jnp.float32) * 0.1,
                "b": (jax.random.normal(kb, (1, d_out), jnp.float32) * 0.1
                      if bias else jnp.zeros((1, d_out), jnp.float32)),
                "gamma": jnp.ones((1, d_out), jnp.float32),
                "beta": jnp.zeros((1, d_out), jnp.float32),
            }
            if d_in != d_out:
                p["skip_w"] = (
                    jax.random.normal(ks, (d_in, d_out), jnp.float32) * 0.1)
            layers.append(("resblock", p))
        else:
            p = {
                "w": jax.random.normal(kw, (dim_hidden, dim_out),
                                       jnp.float32) * 0.1,
                "b": (jax.random.normal(kb, (1, dim_out), jnp.float32) * 0.1
                      if bias else jnp.zeros((1, dim_out), jnp.float32)),
            }
            layers.append(("linear", p))
    return layers


# ---------------------------------------------------------------------------
# Pure-JAX reference (faithful, two-pass LayerNorm) for correctness check
# ---------------------------------------------------------------------------
def mlp_reference(x, layers):
    for kind, p in layers:
        if kind == "resblock":
            h = x @ p["w"] + p["b"]
            mean = jnp.mean(h, axis=-1, keepdims=True)
            var = jnp.mean(jnp.square(h - mean), axis=-1, keepdims=True)
            h = (h - mean) * lax.rsqrt(var + LN_EPS)
            h = h * p["gamma"] + p["beta"]
            identity = x @ p["skip_w"] if "skip_w" in p else x
            out = h + identity
            x = out * jax.nn.sigmoid(out)
        else:
            x = x @ p["w"] + p["b"]
    return x


if __name__ == "__main__":
    key = jax.random.PRNGKey(0)
    k_params, k_x = jax.random.split(key)

    dim_in, dim_out, dim_hidden, num_layers = 4, 3, 32, 3
    N = 256  # number of input points (rows)

    layers = init_mlp(k_params, dim_in, dim_out, dim_hidden, num_layers)
    x = jax.random.normal(k_x, (N, dim_in), jnp.float32)

    y = mlp_forward(x, layers)
    y = jax.block_until_ready(y)

    y_ref = mlp_reference(x, layers)
    assert y.shape == (N, dim_out)
    assert jnp.allclose(y, y_ref, atol=1e-4, rtol=1e-4), "mismatch vs reference"

    print("KERNEL_OK")
</pallas_src>

<mosaic_0001>
module attributes {stable_mosaic.version = 11 : i64} {
  func.func @fused_mlp_kernel(%arg0: i32, %arg1: memref<128x4xf32, #tpu.memory_space<vmem>>, %arg2: memref<4x256xf32, #tpu.memory_space<vmem>>, %arg3: memref<1x128xf32, #tpu.memory_space<vmem>>, %arg4: memref<1x128xf32, #tpu.memory_space<vmem>>, %arg5: memref<1x128xf32, #tpu.memory_space<vmem>>, %arg6: memref<128x128xf32, #tpu.memory_space<vmem>>, %arg7: memref<1x128xf32, #tpu.memory_space<vmem>>, %arg8: memref<1x128xf32, #tpu.memory_space<vmem>>, %arg9: memref<1x128xf32, #tpu.memory_space<vmem>>, %arg10: memref<128x3xf32, #tpu.memory_space<vmem>>, %arg11: memref<1x3xf32, #tpu.memory_space<vmem>>, %arg12: memref<128x3xf32, #tpu.memory_space<vmem>>) attributes {dimension_semantics = [#tpu.dimension_semantics<parallel>], iteration_bounds = array<i64: 2>, scalar_prefetch = 0 : i64, scratch_operands = 0 : i64, tpu.core_type = #tpu.core_type<tc>, window_params = [{transform_indices = @transform_0, window_bounds = array<i64: 128, 4>}, {pipeline_mode = #tpu.pipeline_mode<synchronous>, transform_indices = @transform_1, window_bounds = array<i64: 4, 256>}, {pipeline_mode = #tpu.pipeline_mode<synchronous>, transform_indices = @transform_2, window_bounds = array<i64: 1, 128>}, {pipeline_mode = #tpu.pipeline_mode<synchronous>, transform_indices = @transform_3, window_bounds = array<i64: 1, 128>}, {pipeline_mode = #tpu.pipeline_mode<synchronous>, transform_indices = @transform_4, window_bounds = array<i64: 1, 128>}, {pipeline_mode = #tpu.pipeline_mode<synchronous>, transform_indices = @transform_5, window_bounds = array<i64: 128, 128>}, {pipeline_mode = #tpu.pipeline_mode<synchronous>, transform_indices = @transform_6, window_bounds = array<i64: 1, 128>}, {pipeline_mode = #tpu.pipeline_mode<synchronous>, transform_indices = @transform_7, window_bounds = array<i64: 1, 128>}, {pipeline_mode = #tpu.pipeline_mode<synchronous>, transform_indices = @transform_8, window_bounds = array<i64: 1, 128>}, {pipeline_mode = #tpu.pipeline_mode<synchronous>, transform_indices = @transform_9, window_bounds = array<i64: 128, 3>}, {pipeline_mode = #tpu.pipeline_mode<synchronous>, transform_indices = @transform_10, window_bounds = array<i64: 1, 3>}, {transform_indices = @transform_11, window_bounds = array<i64: 128, 3>}]} {
    %c0 = arith.constant 0 : index
    %c0_0 = arith.constant 0 : index
    %0 = vector.load %arg1[%c0, %c0_0] : memref<128x4xf32, #tpu.memory_space<vmem>>, vector<128x4xf32>
    %c0_1 = arith.constant 0 : index
    %c0_2 = arith.constant 0 : index
    %1 = vector.load %arg2[%c0_1, %c0_2] : memref<4x256xf32, #tpu.memory_space<vmem>>, vector<4x256xf32>
    %cst = arith.constant dense<0.000000e+00> : vector<128x256xf32>
    %2 = tpu.matmul %0, %1, %cst {dimension_numbers = #tpu.dot_dimension_numbers<[1], [0], [0], [1], [0, 0, 1, 1], [], []>} : vector<128x4xf32>, vector<4x256xf32>, vector<128x256xf32> -> vector<128x256xf32>
    %3 = vector.extract_strided_slice %2 {offsets = [0, 0], sizes = [128, 128], strides = [1, 1]} : vector<128x256xf32> to vector<128x128xf32>
    %c0_3 = arith.constant 0 : index
    %c0_4 = arith.constant 0 : index
    %4 = vector.load %arg3[%c0_3, %c0_4] : memref<1x128xf32, #tpu.memory_space<vmem>>, vector<1x128xf32>
    %5 = vector.broadcast %4 : vector<1x128xf32> to vector<128x128xf32>
    %6 = arith.addf %3, %5 : vector<128x128xf32>
    %7 = vector.extract_strided_slice %2 {offsets = [0, 128], sizes = [128, 128], strides = [1, 1]} : vector<128x256xf32> to vector<128x128xf32>
    %c0_5 = arith.constant 0 : index
    %c0_6 = arith.constant 0 : index
    %8 = vector.load %arg4[%c0_5, %c0_6] : memref<1x128xf32, #tpu.memory_space<vmem>>, vector<1x128xf32>
    %c0_7 = arith.constant 0 : index
    %c0_8 = arith.constant 0 : index
    %9 = vector.load %arg5[%c0_7, %c0_8] : memref<1x128xf32, #tpu.memory_space<vmem>>, vector<1x128xf32>
    %cst_9 = arith.constant dense<0.000000e+00> : vector<128xf32>
    %10 = vector.multi_reduction <add>, %6, %cst_9 [1] : vector<128x128xf32> to vector<128xf32>
    %11 = vector.shape_cast %10 : vector<128xf32> to vector<128x1xf32>
    %12 = arith.mulf %6, %6 : vector<128x128xf32>
    %cst_10 = arith.constant dense<0.000000e+00> : vector<128xf32>
    %13 = vector.multi_reduction <add>, %12, %cst_10 [1] : vector<128x128xf32> to vector<128xf32>
    %14 = vector.shape_cast %13 : vector<128xf32> to vector<128x1xf32>
    %cst_11 = arith.constant 3.125000e-02 : f32
    %15 = vector.broadcast %cst_11 : f32 to vector<128x1xf32>
    %16 = arith.mulf %11, %15 : vector<128x1xf32>
    %cst_12 = arith.constant 3.125000e-02 : f32
    %17 = vector.broadcast %cst_12 : f32 to vector<128x1xf32>
    %18 = arith.mulf %14, %17 : vector<128x1xf32>
    %19 = arith.mulf %16, %16 : vector<128x1xf32>
    %20 = arith.subf %18, %19 : vector<128x1xf32>
    %cst_13 = arith.constant 9.99999974E-6 : f32
    %21 = vector.broadcast %cst_13 : f32 to vector<128x1xf32>
    %22 = arith.addf %20, %21 : vector<128x1xf32>
    %23 = math.rsqrt %22 : vector<128x1xf32>
    %24 = vector.broadcast %8 : vector<1x128xf32> to vector<128x128xf32>
    %25 = vector.broadcast %23 : vector<128x1xf32> to vector<128x128xf32>
    %26 = arith.mulf %24, %25 : vector<128x128xf32>
    %27 = vector.broadcast %16 : vector<128x1xf32> to vector<128x128xf32>
    %28 = arith.subf %6, %27 : vector<128x128xf32>
    %29 = arith.mulf %28, %26 : vector<128x128xf32>
    %30 = vector.broadcast %9 : vector<1x128xf32> to vector<128x128xf32>
    %31 = arith.addf %29, %30 : vector<128x128xf32>
    %32 = arith.addf %31, %7 : vector<128x128xf32>
    %33 = arith.negf %32 : vector<128x128xf32>
    %34 = math.exp %33 : vector<128x128xf32>
    %cst_14 = arith.constant 1.000000e+00 : f32
    %35 = vector.broadcast %cst_14 : f32 to vector<128x128xf32>
    %36 = arith.addf %35, %34 : vector<128x128xf32>
    %37 = arith.divf %35, %36 : vector<128x128xf32>
    %38 = arith.mulf %32, %37 : vector<128x128xf32>
    %c0_15 = arith.constant 0 : index
    %c0_16 = arith.constant 0 : index
    %39 = vector.load %arg6[%c0_15, %c0_16] : memref<128x128xf32, #tpu.memory_space<vmem>>, vector<128x128xf32>
    %cst_17 = arith.constant dense<0.000000e+00> : vector<128x128xf32>
    %40 = tpu.matmul %38, %39, %cst_17 {dimension_numbers = #tpu.dot_dimension_numbers<[1], [0], [0], [1], [0, 0, 1, 1], [], []>} : vector<128x128xf32>, vector<128x128xf32>, vector<128x128xf32> -> vector<128x128xf32>
    %c0_18 = arith.constant 0 : index
    %c0_19 = arith.constant 0 : index
    %41 = vector.load %arg7[%c0_18, %c0_19] : memref<1x128xf32, #tpu.memory_space<vmem>>, vector<1x128xf32>
    %42 = vector.broadcast %41 : vector<1x128xf32> to vector<128x128xf32>
    %43 = arith.addf %40, %42 : vector<128x128xf32>
    %c0_20 = arith.constant 0 : index
    %c0_21 = arith.constant 0 : index
    %44 = vector.load %arg8[%c0_20, %c0_21] : memref<1x128xf32, #tpu.memory_space<vmem>>, vector<1x128xf32>
    %c0_22 = arith.constant 0 : index
    %c0_23 = arith.constant 0 : index
    %45 = vector.load %arg9[%c0_22, %c0_23] : memref<1x128xf32, #tpu.memory_space<vmem>>, vector<1x128xf32>
    %cst_24 = arith.constant dense<0.000000e+00> : vector<128xf32>
    %46 = vector.multi_reduction <add>, %43, %cst_24 [1] : vector<128x128xf32> to vector<128xf32>
    %47 = vector.shape_cast %46 : vector<128xf32> to vector<128x1xf32>
    %48 = arith.mulf %43, %43 : vector<128x128xf32>
    %cst_25 = arith.constant dense<0.000000e+00> : vector<128xf32>
    %49 = vector.multi_reduction <add>, %48, %cst_25 [1] : vector<128x128xf32> to vector<128xf32>
    %50 = vector.shape_cast %49 : vector<128xf32> to vector<128x1xf32>
    %cst_26 = arith.constant 3.125000e-02 : f32
    %51 = vector.broadcast %cst_26 : f32 to vector<128x1xf32>
    %52 = arith.mulf %47, %51 : vector<128x1xf32>
    %cst_27 = arith.constant 3.125000e-02 : f32
    %53 = vector.broadcast %cst_27 : f32 to vector<128x1xf32>
    %54 = arith.mulf %50, %53 : vector<128x1xf32>
    %55 = arith.mulf %52, %52 : vector<128x1xf32>
    %56 = arith.subf %54, %55 : vector<128x1xf32>
    %cst_28 = arith.constant 9.99999974E-6 : f32
    %57 = vector.broadcast %cst_28 : f32 to vector<128x1xf32>
    %58 = arith.addf %56, %57 : vector<128x1xf32>
    %59 = math.rsqrt %58 : vector<128x1xf32>
    %60 = vector.broadcast %44 : vector<1x128xf32> to vector<128x128xf32>
    %61 = vector.broadcast %59 : vector<128x1xf32> to vector<128x128xf32>
    %62 = arith.mulf %60, %61 : vector<128x128xf32>
    %63 = vector.broadcast %52 : vector<128x1xf32> to vector<128x128xf32>
    %64 = arith.subf %43, %63 : vector<128x128xf32>
    %65 = arith.mulf %64, %62 : vector<128x128xf32>
    %66 = vector.broadcast %45 : vector<1x128xf32> to vector<128x128xf32>
    %67 = arith.addf %65, %66 : vector<128x128xf32>
    %68 = arith.addf %67, %38 : vector<128x128xf32>
    %69 = arith.negf %68 : vector<128x128xf32>
    %70 = math.exp %69 : vector<128x128xf32>
    %cst_29 = arith.constant 1.000000e+00 : f32
    %71 = vector.broadcast %cst_29 : f32 to vector<128x128xf32>
    %72 = arith.addf %71, %70 : vector<128x128xf32>
    %73 = arith.divf %71, %72 : vector<128x128xf32>
    %74 = arith.mulf %68, %73 : vector<128x128xf32>
    %c0_30 = arith.constant 0 : index
    %c0_31 = arith.constant 0 : index
    %75 = vector.load %arg10[%c0_30, %c0_31] : memref<128x3xf32, #tpu.memory_space<vmem>>, vector<128x3xf32>
    %cst_32 = arith.constant dense<0.000000e+00> : vector<128x3xf32>
    %76 = tpu.matmul %74, %75, %cst_32 {dimension_numbers = #tpu.dot_dimension_numbers<[1], [0], [0], [1], [0, 0, 1, 1], [], []>} : vector<128x128xf32>, vector<128x3xf32>, vector<128x3xf32> -> vector<128x3xf32>
    %c0_33 = arith.constant 0 : index
    %c0_34 = arith.constant 0 : index
    %77 = vector.load %arg11[%c0_33, %c0_34] : memref<1x3xf32, #tpu.memory_space<vmem>>, vector<1x3xf32>
    %78 = vector.broadcast %77 : vector<1x3xf32> to vector<128x3xf32>
    %79 = arith.addf %76, %78 : vector<128x3xf32>
    %c0_35 = arith.constant 0 : index
    %c0_36 = arith.constant 0 : index
    %80 = vector.load %arg12[%c0_35, %c0_36] : memref<128x3xf32, #tpu.memory_space<vmem>>, vector<128x3xf32>
    tpu.vector_store %arg12[%c0_35, %c0_36], %79 {strides = array<i32>} : memref<128x3xf32, #tpu.memory_space<vmem>>, vector<128x3xf32>,
    return
  }
  func.func @transform_0(%arg0: i32) -> (i32, i32) {
    %c0_i32 = arith.constant 0 : i32
    %c0_i32_0 = arith.constant 0 : i32
    return %arg0, %c0_i32 : i32, i32
  }
  func.func @transform_1(%arg0: i32) -> (i32, i32) {
    %c0_i32 = arith.constant 0 : i32
    %c0_i32_0 = arith.constant 0 : i32
    %c0_i32_1 = arith.constant 0 : i32
    return %c0_i32, %c0_i32_0 : i32, i32
  }
  func.func @transform_2(%arg0: i32) -> (i32, i32) {
    %c0_i32 = arith.constant 0 : i32
    %c0_i32_0 = arith.constant 0 : i32
    %c0_i32_1 = arith.constant 0 : i32
    return %c0_i32, %c0_i32_0 : i32, i32
  }
  func.func @transform_3(%arg0: i32) -> (i32, i32) {
    %c0_i32 = arith.constant 0 : i32
    %c0_i32_0 = arith.constant 0 : i32
    %c0_i32_1 = arith.constant 0 : i32
    return %c0_i32, %c0_i32_0 : i32, i32
  }
  func.func @transform_4(%arg0: i32) -> (i32, i32) {
    %c0_i32 = arith.constant 0 : i32
    %c0_i32_0 = arith.constant 0 : i32
    %c0_i32_1 = arith.constant 0 : i32
    return %c0_i32, %c0_i32_0 : i32, i32
  }
  func.func @transform_5(%arg0: i32) -> (i32, i32) {
    %c0_i32 = arith.constant 0 : i32
    %c0_i32_0 = arith.constant 0 : i32
    %c0_i32_1 = arith.constant 0 : i32
    return %c0_i32, %c0_i32_0 : i32, i32
  }
  func.func @transform_6(%arg0: i32) -> (i32, i32) {
    %c0_i32 = arith.constant 0 : i32
    %c0_i32_0 = arith.constant 0 : i32
    %c0_i32_1 = arith.constant 0 : i32
    return %c0_i32, %c0_i32_0 : i32, i32
  }
  func.func @transform_7(%arg0: i32) -> (i32, i32) {
    %c0_i32 = arith.constant 0 : i32
    %c0_i32_0 = arith.constant 0 : i32
    %c0_i32_1 = arith.constant 0 : i32
    return %c0_i32, %c0_i32_0 : i32, i32
  }
  func.func @transform_8(%arg0: i32) -> (i32, i32) {
    %c0_i32 = arith.constant 0 : i32
    %c0_i32_0 = arith.constant 0 : i32
    %c0_i32_1 = arith.constant 0 : i32
    return %c0_i32, %c0_i32_0 : i32, i32
  }
  func.func @transform_9(%arg0: i32) -> (i32, i32) {
    %c0_i32 = arith.constant 0 : i32
    %c0_i32_0 = arith.constant 0 : i32
    %c0_i32_1 = arith.constant 0 : i32
    return %c0_i32, %c0_i32_0 : i32, i32
  }
  func.func @transform_10(%arg0: i32) -> (i32, i32) {
    %c0_i32 = arith.constant 0 : i32
    %c0_i32_0 = arith.constant 0 : i32
    %c0_i32_1 = arith.constant 0 : i32
    return %c0_i32, %c0_i32_0 : i32, i32
  }
  func.func @transform_11(%arg0: i32) -> (i32, i32) {
    %c0_i32 = arith.constant 0 : i32
    %c0_i32_0 = arith.constant 0 : i32
    return %arg0, %c0_i32 : i32, i32
  }
}

</mosaic_0001>

<llo_original>
// kernel: tpu_custom_call.1
$region0: #{tpu_custom_call.1}
  #allocation0 [shape = 'u32[]', space=smem, size = 0x4, offset = 0x4, fixed_abs, tag = 'smem constant byte address 0x4 - core index']
  #allocation1 [shape = 'u32[72,128]{1,0:T(1,128)}', space=vmem, size = 0x9000, scoped, tag = 'internal scratch']
  %s0 = inlined_call_operand.vmem [shape: f32[256,4], index: 0, kind: input, shape index: {}]
  %s1 = inlined_call_operand.vmem [shape: f32[4,256], index: 1, kind: input, shape index: {}]
  %s2 = inlined_call_operand.vmem [shape: f32[1,128], index: 2, kind: input, shape index: {}]
  %s3 = inlined_call_operand.vmem [shape: f32[1,128], index: 3, kind: input, shape index: {}]
  %s4 = inlined_call_operand.vmem [shape: f32[1,128], index: 4, kind: input, shape index: {}]
  %s5 = inlined_call_operand.vmem [shape: f32[128,128], index: 5, kind: input, shape index: {}]
  %s6 = inlined_call_operand.vmem [shape: f32[1,128], index: 6, kind: input, shape index: {}]
  %s7 = inlined_call_operand.vmem [shape: f32[1,128], index: 7, kind: input, shape index: {}]
  %s8 = inlined_call_operand.vmem [shape: f32[1,128], index: 8, kind: input, shape index: {}]
  %s9 = inlined_call_operand.vmem [shape: f32[128,3], index: 9, kind: input, shape index: {}]
  %s10 = inlined_call_operand.vmem [shape: f32[1,3], index: 10, kind: input, shape index: {}]
  %s11 = inlined_call_operand.vmem [shape: f32[256,3], index: 11, kind: output, shape index: {}]
  %s12 = sld [smem:[#allocation0]]
  $region77: #{tpu_custom_call.1} parent=0
    _
  %s14 = ssub.s32 1, %s12
  %s15 = scalar_select 0, %s14, %s12
  loop: start=0, step=1, limit=4
  $region2: #{tpu_custom_call.1} parent=0 // loop_pre_header
    _
  $region3: #{tpu_custom_call.1} parent=0 // loop_header
    %s17 = sphi 0, %s21
    %p18 = scmp.ge.s32.totalorder %s17, 4
    %s27 = sphi 0, %s29
    %s30 = sphi 0, %s27
    %s31 = sphi 0, %s30
    %s47 = sphi 0, %s31
    %s51 = sphi 0, %s51
    %s53 = sphi 0, %s51
    %s54 = sphi 0, %s53
    %s68 = sphi 0, %s54
    %s72 = sphi 0, %s72
    %s74 = sphi 0, %s72
    %s75 = sphi 0, %s74
    %s89 = sphi 0, %s75
    %s93 = sphi 0, %s93
    %s95 = sphi 0, %s93
    %s96 = sphi 0, %s95
    %s110 = sphi 0, %s96
    %s114 = sphi 0, %s114
    %s116 = sphi 0, %s114
    %s117 = sphi 0, %s116
    %s131 = sphi 0, %s117
    %s135 = sphi 0, %s135
    %s137 = sphi 0, %s135
    %s138 = sphi 0, %s137
    %s152 = sphi 0, %s138
    %s156 = sphi 0, %s156
    %s158 = sphi 0, %s156
    %s159 = sphi 0, %s158
    %s173 = sphi 0, %s159
    %s177 = sphi 0, %s177
    %s179 = sphi 0, %s177
    %s180 = sphi 0, %s179
    %s194 = sphi 0, %s180
    %s198 = sphi 0, %s198
    %s200 = sphi 0, %s198
    %s201 = sphi 0, %s200
    %s215 = sphi 0, %s201
    %s219 = sphi 0, %s219
    %s221 = sphi 0, %s219
    %s222 = sphi 0, %s221
    %s236 = sphi 0, %s222
    %s240 = sphi 0, %s240
    %s242 = sphi 0, %s240
    %s243 = sphi 0, %s242
    %s257 = sphi 0, %s243
    %s263 = sphi 0, %s265
    %s266 = sphi 0, %s263
    %s267 = sphi 0, %s266
    %s283 = sphi 0, %s267
  $region4: #{tpu_custom_call.1} parent=0 // loop_header_branch
    %20 = sbr.rel (%p18) target = $region8
  $region5: #{tpu_custom_call.1} parent=0 // loop_body
    %s22 = ssub.s32 %s17, 1
    %s23 = ssub.s32 %s17, 2
    %s24 = sadd.s32 %s17, 1
    %s25 = ssub.s32 %s17, %s24
    %p26 = scmp.eq.s32.totalorder %s25, 0
    %s28 = sadd.s32 %s27, 1
    %s29 = scalar_select %p26, %s27, %s28
    %p32 = pneg %p26
    %p33 = scmp.eq.s32.totalorder %s17, 1
    %p34 = por %p32, %p33
    %p35 = scmp.ne.s32.totalorder %s27, %s30
    %p36 = scmp.eq.s32.totalorder %s17, 0
    %p37 = por %p35, %p36
    %p38 = scmp.ne.s32.totalorder %s27, %s30
    %p39 = scmp.eq.s32.totalorder %s22, 1
    %p40 = por %p38, %p39
    %p41 = scmp.ne.s32.totalorder %s30, %s31
    %p42 = scmp.eq.s32.totalorder %s22, 0
    %p43 = por %p41, %p42
    %p44 = scmp.ne.s32.totalorder %s30, %s31
    %p45 = scmp.eq.s32.totalorder %s23, 1
    %p46 = por %p44, %p45
    %p48 = scmp.ne.s32.totalorder %s31, %s47
    %p49 = scmp.eq.s32.totalorder %s23, 0
    %p50 = por %p48, %p49
    %s52 = sadd.s32 %s51, 1
    %p55 = scmp.eq.s32.totalorder %s17, 1
    %p56 = scmp.ne.s32.totalorder %s51, %s53
    %p57 = scmp.eq.s32.totalorder %s17, 0
    %p58 = por %p56, %p57
    %p59 = scmp.ne.s32.totalorder %s51, %s53
    %p60 = scmp.eq.s32.totalorder %s22, 1
    %p61 = por %p59, %p60
    %p62 = scmp.ne.s32.totalorder %s53, %s54
    %p63 = scmp.eq.s32.totalorder %s22, 0
    %p64 = por %p62, %p63
    %p65 = scmp.ne.s32.totalorder %s53, %s54
    %p66 = scmp.eq.s32.totalorder %s23, 1
    %p67 = por %p65, %p66
    %p69 = scmp.ne.s32.totalorder %s54, %s68
    %p70 = scmp.eq.s32.totalorder %s23, 0
    %p71 = por %p69, %p70
    %s73 = sadd.s32 %s72, 1
    %p76 = scmp.eq.s32.totalorder %s17, 1
    %p77 = scmp.ne.s32.totalorder %s72, %s74
    %p78 = scmp.eq.s32.totalorder %s17, 0
    %p79 = por %p77, %p78
    %p80 = scmp.ne.s32.totalorder %s72, %s74
    %p81 = scmp.eq.s32.totalorder %s22, 1
    %p82 = por %p80, %p81
    %p83 = scmp.ne.s32.totalorder %s74, %s75
    %p84 = scmp.eq.s32.totalorder %s22, 0
    %p85 = por %p83, %p84
    %p86 = scmp.ne.s32.totalorder %s74, %s75
    %p87 = scmp.eq.s32.totalorder %s23, 1
    %p88 = por %p86, %p87
    %p90 = scmp.ne.s32.totalorder %s75, %s89
    %p91 = scmp.eq.s32.totalorder %s23, 0
    %p92 = por %p90, %p91
    %s94 = sadd.s32 %s93, 1
    %p97 = scmp.eq.s32.totalorder %s17, 1
    %p98 = scmp.ne.s32.totalorder %s93, %s95
    %p99 = scmp.eq.s32.totalorder %s17, 0
    %p100 = por %p98, %p99
    %p101 = scmp.ne.s32.totalorder %s93, %s95
    %p102 = scmp.eq.s32.totalorder %s22, 1
    %p103 = por %p101, %p102
    %p104 = scmp.ne.s32.totalorder %s95, %s96
    %p105 = scmp.eq.s32.totalorder %s22, 0
    %p106 = por %p104, %p105
    %p107 = scmp.ne.s32.totalorder %s95, %s96
    %p108 = scmp.eq.s32.totalorder %s23, 1
    %p109 = por %p107, %p108
    %p111 = scmp.ne.s32.totalorder %s96, %s110
    %p112 = scmp.eq.s32.totalorder %s23, 0
    %p113 = por %p111, %p112
    %s115 = sadd.s32 %s114, 1
    %p118 = scmp.eq.s32.totalorder %s17, 1
    %p119 = scmp.ne.s32.totalorder %s114, %s116
    %p120 = scmp.eq.s32.totalorder %s17, 0
    %p121 = por %p119, %p120
    %p122 = scmp.ne.s32.totalorder %s114, %s116
    %p123 = scmp.eq.s32.totalorder %s22, 1
    %p124 = por %p122, %p123
    %p125 = scmp.ne.s32.totalorder %s116, %s117
    %p126 = scmp.eq.s32.totalorder %s22, 0
    %p127 = por %p125, %p126
    %p128 = scmp.ne.s32.totalorder %s116, %s117
    %p129 = scmp.eq.s32.totalorder %s23, 1
    %p130 = por %p128, %p129
    %p132 = scmp.ne.s32.totalorder %s117, %s131
    %p133 = scmp.eq.s32.totalorder %s23, 0
    %p134 = por %p132, %p133
    %s136 = sadd.s32 %s135, 1
    %p139 = scmp.eq.s32.totalorder %s17, 1
    %p140 = scmp.ne.s32.totalorder %s135, %s137
    %p141 = scmp.eq.s32.totalorder %s17, 0
    %p142 = por %p140, %p141
    %p143 = scmp.ne.s32.totalorder %s135, %s137
    %p144 = scmp.eq.s32.totalorder %s22, 1
    %p145 = por %p143, %p144
    %p146 = scmp.ne.s32.totalorder %s137, %s138
    %p147 = scmp.eq.s32.totalorder %s22, 0
    %p148 = por %p146, %p147
    %p149 = scmp.ne.s32.totalorder %s137, %s138
    %p150 = scmp.eq.s32.totalorder %s23, 1
    %p151 = por %p149, %p150
    %p153 = scmp.ne.s32.totalorder %s138, %s152
    %p154 = scmp.eq.s32.totalorder %s23, 0
    %p155 = por %p153, %p154
    %s157 = sadd.s32 %s156, 1
    %p160 = scmp.eq.s32.totalorder %s17, 1
    %p161 = scmp.ne.s32.totalorder %s156, %s158
    %p162 = scmp.eq.s32.totalorder %s17, 0
    %p163 = por %p161, %p162
    %p164 = scmp.ne.s32.totalorder %s156, %s158
    %p165 = scmp.eq.s32.totalorder %s22, 1
    %p166 = por %p164, %p165
    %p167 = scmp.ne.s32.totalorder %s158, %s159
    %p168 = scmp.eq.s32.totalorder %s22, 0
    %p169 = por %p167, %p168
    %p170 = scmp.ne.s32.totalorder %s158, %s159
    %p171 = scmp.eq.s32.totalorder %s23, 1
    %p172 = por %p170, %p171
    %p174 = scmp.ne.s32.totalorder %s159, %s173
    %p175 = scmp.eq.s32.totalorder %s23, 0
    %p176 = por %p174, %p175
    %s178 = sadd.s32 %s177, 1
    %p181 = scmp.eq.s32.totalorder %s17, 1
    %p182 = scmp.ne.s32.totalorder %s177, %s179
    %p183 = scmp.eq.s32.totalorder %s17, 0
    %p184 = por %p182, %p183
    %p185 = scmp.ne.s32.totalorder %s177, %s179
    %p186 = scmp.eq.s32.totalorder %s22, 1
    %p187 = por %p185, %p186
    %p188 = scmp.ne.s32.totalorder %s179, %s180
    %p189 = scmp.eq.s32.totalorder %s22, 0
    %p190 = por %p188, %p189
    %p191 = scmp.ne.s32.totalorder %s179, %s180
    %p192 = scmp.eq.s32.totalorder %s23, 1
    %p193 = por %p191, %p192
    %p195 = scmp.ne.s32.totalorder %s180, %s194
    %p196 = scmp.eq.s32.totalorder %s23, 0
    %p197 = por %p195, %p196
    %s199 = sadd.s32 %s198, 1
    %p202 = scmp.eq.s32.totalorder %s17, 1
    %p203 = scmp.ne.s32.totalorder %s198, %s200
    %p204 = scmp.eq.s32.totalorder %s17, 0
    %p205 = por %p203, %p204
    %p206 = scmp.ne.s32.totalorder %s198, %s200
    %p207 = scmp.eq.s32.totalorder %s22, 1
    %p208 = por %p206, %p207
    %p209 = scmp.ne.s32.totalorder %s200, %s201
    %p210 = scmp.eq.s32.totalorder %s22, 0
    %p211 = por %p209, %p210
    %p212 = scmp.ne.s32.totalorder %s200, %s201
    %p213 = scmp.eq.s32.totalorder %s23, 1
    %p214 = por %p212, %p213
    %p216 = scmp.ne.s32.totalorder %s201, %s215
    %p217 = scmp.eq.s32.totalorder %s23, 0
    %p218 = por %p216, %p217
    %s220 = sadd.s32 %s219, 1
    %p223 = scmp.eq.s32.totalorder %s17, 1
    %p224 = scmp.ne.s32.totalorder %s219, %s221
    %p225 = scmp.eq.s32.totalorder %s17, 0
    %p226 = por %p224, %p225
    %p227 = scmp.ne.s32.totalorder %s219, %s221
    %p228 = scmp.eq.s32.totalorder %s22, 1
    %p229 = por %p227, %p228
    %p230 = scmp.ne.s32.totalorder %s221, %s222
    %p231 = scmp.eq.s32.totalorder %s22, 0
    %p232 = por %p230, %p231
    %p233 = scmp.ne.s32.totalorder %s221, %s222
    %p234 = scmp.eq.s32.totalorder %s23, 1
    %p235 = por %p233, %p234
    %p237 = scmp.ne.s32.totalorder %s222, %s236
    %p238 = scmp.eq.s32.totalorder %s23, 0
    %p239 = por %p237, %p238
    %s241 = sadd.s32 %s240, 1
    %p244 = scmp.eq.s32.totalorder %s17, 1
    %p245 = scmp.ne.s32.totalorder %s240, %s242
    %p246 = scmp.eq.s32.totalorder %s17, 0
    %p247 = por %p245, %p246
    %p248 = scmp.ne.s32.totalorder %s240, %s242
    %p249 = scmp.eq.s32.totalorder %s22, 1
    %p250 = por %p248, %p249
    %p251 = scmp.ne.s32.totalorder %s242, %s243
    %p252 = scmp.eq.s32.totalorder %s22, 0
    %p253 = por %p251, %p252
    %p254 = scmp.ne.s32.totalorder %s242, %s243
    %p255 = scmp.eq.s32.totalorder %s23, 1
    %p256 = por %p254, %p255
    %p258 = scmp.ne.s32.totalorder %s243, %s257
    %p259 = scmp.eq.s32.totalorder %s23, 0
    %p260 = por %p258, %p259
    %s261 = ssub.s32 %s17, %s24
    %p262 = scmp.eq.s32.totalorder %s261, 0
    %s264 = sadd.s32 %s263, 1
    %s265 = scalar_select %p262, %s263, %s264
    %p268 = pneg %p262
    %p269 = scmp.eq.s32.totalorder %s17, 1
    %p270 = por %p268, %p269
    %p271 = scmp.ne.s32.totalorder %s263, %s266
    %p272 = scmp.eq.s32.totalorder %s17, 0
    %p273 = por %p271, %p272
    %p274 = scmp.ne.s32.totalorder %s263, %s266
    %p275 = scmp.eq.s32.totalorder %s22, 1
    %p276 = por %p274, %p275
    %p277 = scmp.ne.s32.totalorder %s266, %s267
    %p278 = scmp.eq.s32.totalorder %s22, 0
    %p279 = por %p277, %p278
    %p280 = scmp.ne.s32.totalorder %s266, %s267
    %p281 = scmp.eq.s32.totalorder %s23, 1
    %p282 = por %p280, %p281
    %p284 = scmp.ne.s32.totalorder %s267, %s283
    %p285 = scmp.eq.s32.totalorder %s23, 0
    %p286 = por %p284, %p285
    %p287 = scmp.le.s32.totalorder 1, %s17
    %p288 = scmp.lt.s32.totalorder %s17, 3
    %p289 = pnand %p287, %p288
    %p290 = pneg %p289
    // Predicated region
    $region9: #{tpu_custom_call.1} parent=5 // pred_check
      _
    $region10: #{tpu_custom_call.1} parent=5 // pred_check_branch
      %292 = sbr.rel (%p289) target = $region12
    $region11: #{tpu_custom_call.1} parent=5 // pred_region
      %s293 = ssub.s32 %s17, 1
      // Predicated region
      $region13: #{tpu_custom_call.1} parent=11 // pred_check
        %p294 = pneg %p64
      $region14: #{tpu_custom_call.1} parent=11 // pred_check_branch
        %296 = sbr.rel (%p294) target = $region16
      $region15: #{tpu_custom_call.1} parent=11 // pred_region
        _
      $region16: #{tpu_custom_call.1} parent=11 // pred_fallthru
        _
      // Predicated region
      $region17: #{tpu_custom_call.1} parent=11 // pred_check
        %p297 = pneg %p85
      $region18: #{tpu_custom_call.1} parent=11 // pred_check_branch
        %299 = sbr.rel (%p297) target = $region20
      $region19: #{tpu_custom_call.1} parent=11 // pred_region
        _
      $region20: #{tpu_custom_call.1} parent=11 // pred_fallthru
        _
      // Predicated region
      $region21: #{tpu_custom_call.1} parent=11 // pred_check
        %p300 = pneg %p106
      $region22: #{tpu_custom_call.1} parent=11 // pred_check_branch
        %302 = sbr.rel (%p300) target = $region24
      $region23: #{tpu_custom_call.1} parent=11 // pred_region
        _
      $region24: #{tpu_custom_call.1} parent=11 // pred_fallthru
        _
      // Predicated region
      $region25: #{tpu_custom_call.1} parent=11 // pred_check
        %p303 = pneg %p127
      $region26: #{tpu_custom_call.1} parent=11 // pred_check_branch
        %305 = sbr.rel (%p303) target = $region28
      $region27: #{tpu_custom_call.1} parent=11 // pred_region
        _
      $region28: #{tpu_custom_call.1} parent=11 // pred_fallthru
        _
      // Predicated region
      $region29: #{tpu_custom_call.1} parent=11 // pred_check
        %p306 = pneg %p148
      $region30: #{tpu_custom_call.1} parent=11 // pred_check_branch
        %308 = sbr.rel (%p306) target = $region32
      $region31: #{tpu_custom_call.1} parent=11 // pred_region
        _
      $region32: #{tpu_custom_call.1} parent=11 // pred_fallthru
        _
      // Predicated region
      $region33: #{tpu_custom_call.1} parent=11 // pred_check
        %p309 = pneg %p169
      $region34: #{tpu_custom_call.1} parent=11 // pred_check_branch
        %311 = sbr.rel (%p309) target = $region36
      $region35: #{tpu_custom_call.1} parent=11 // pred_region
        _
      $region36: #{tpu_custom_call.1} parent=11 // pred_fallthru
        _
      // Predicated region
      $region37: #{tpu_custom_call.1} parent=11 // pred_check
        %p312 = pneg %p190
      $region38: #{tpu_custom_call.1} parent=11 // pred_check_branch
        %314 = sbr.rel (%p312) target = $region40
      $region39: #{tpu_custom_call.1} parent=11 // pred_region
        _
      $region40: #{tpu_custom_call.1} parent=11 // pred_fallthru
        _
      // Predicated region
      $region41: #{tpu_custom_call.1} parent=11 // pred_check
        %p315 = pneg %p211
      $region42: #{tpu_custom_call.1} parent=11 // pred_check_branch
        %317 = sbr.rel (%p315) target = $region44
      $region43: #{tpu_custom_call.1} parent=11 // pred_region
        _
      $region44: #{tpu_custom_call.1} parent=11 // pred_fallthru
        _
      // Predicated region
      $region45: #{tpu_custom_call.1} parent=11 // pred_check
        %p318 = pneg %p232
      $region46: #{tpu_custom_call.1} parent=11 // pred_check_branch
        %320 = sbr.rel (%p318) target = $region48
      $region47: #{tpu_custom_call.1} parent=11 // pred_region
        _
      $region48: #{tpu_custom_call.1} parent=11 // pred_fallthru
        _
      // Predicated region
      $region49: #{tpu_custom_call.1} parent=11 // pred_check
        %p321 = pneg %p253
      $region50: #{tpu_custom_call.1} parent=11 // pred_check_branch
        %323 = sbr.rel (%p321) target = $region52
      $region51: #{tpu_custom_call.1} parent=11 // pred_region
        _
      $region52: #{tpu_custom_call.1} parent=11 // pred_fallthru
        _
    $region12: #{tpu_custom_call.1} parent=5 // pred_fallthru
      _
    %p324 = scmp.lt.s32.totalorder %s17, 2
    // Predicated region
    $region53: #{tpu_custom_call.1} parent=5 // pred_check
      %p325 = pneg %p324
    $region54: #{tpu_custom_call.1} parent=5 // pred_check_branch
      %327 = sbr.rel (%p325) target = $region56
    $region55: #{tpu_custom_call.1} parent=5 // pred_region
      // Predicated region
      $region57: #{tpu_custom_call.1} parent=55 // pred_check
        %p328 = pneg %p37
      $region58: #{tpu_custom_call.1} parent=55 // pred_check_branch
        %330 = sbr.rel (%p328) target = $region60
      $region59: #{tpu_custom_call.1} parent=55 // pred_region
        %s331 = smul.u32 16, %s17
        %p332 = scmp.lt.s32.totalorder %s331, 31
        %s333 = scalar_select %p332, %s331, 31
        %s334 = smul.addr %s333, 8
        %s335 = scalar_lea.vmem %s0, %s334
        %s336 = smul.u32 16, %s17
      $region60: #{tpu_custom_call.1} parent=55 // pred_fallthru
        _
    $region56: #{tpu_custom_call.1} parent=5 // pred_fallthru
      _
    %p337 = scmp.le.s32.totalorder 1, %s17
    %p338 = scmp.lt.s32.totalorder %s17, 3
    %p339 = pnand %p337, %p338
    %p340 = pneg %p339
    // Predicated region
    $region61: #{tpu_custom_call.1} parent=5 // pred_check
      _
    $region62: #{tpu_custom_call.1} parent=5 // pred_check_branch
      %342 = sbr.rel (%p339) target = $region64
    $region63: #{tpu_custom_call.1} parent=5 // pred_region
      %s343 = ssub.s32 %s17, 1
      %s344 = smul.u32 16, %s22
      %p345 = scmp.lt.s32.totalorder %s344, 31
      %s346 = scalar_select %p345, %s344, 31
      %s347 = smul.addr %s346, 8
      %s348 = scalar_lea.vmem %s0, %s347
      %p349 = pneg %p43
      %p350 = pneg %p40
      %p351 = pneg %p64
      %p352 = pneg %p61
      %p353 = pneg %p85
      %p354 = pneg %p82
      %p355 = pneg %p106
      %p356 = pneg %p103
      %p357 = pneg %p127
      %p358 = pneg %p124
      %p359 = pneg %p148
      %p360 = pneg %p145
      %p361 = pneg %p169
      %p362 = pneg %p166
      %p363 = pneg %p190
      %p364 = pneg %p187
      %p365 = pneg %p211
      %p366 = pneg %p208
      %p367 = pneg %p232
      %p368 = pneg %p229
      %p369 = pneg %p253
      %p370 = pneg %p250
      %p371 = pneg %p279
      %p372 = pneg %p276
      %s373 = smul.u32 16, %s22
      %p374 = scmp.lt.s32.totalorder %s373, 31
      %s375 = scalar_select %p374, %s373, 31
      %s376 = smul.addr %s375, 8
      %s377 = scalar_lea.vmem %s11, %s376
      %s378 = smul.u32 16, %s22
      %p379 = scmp.lt.s32.totalorder %s378, 31
      %s380 = scalar_select %p379, %s378, 31
      %s381 = smul.addr %s380, 8
      %s382 = scalar_lea.vmem %s0, %s381
      %s383 = smul.u32 16, %s22
      %s384 = smul.u32 16, %s22
      %p385 = scmp.lt.s32.totalorder %s384, 31
      %s386 = scalar_select %p385, %s384, 31
      %s387 = smul.addr %s386, 8
      %s388 = scalar_lea.vmem %s11, %s387
      %s389 = smul.u32 16, %s22
      %v390 = vld [vmem:[%s382] sm:$0xff]
      %v391 = vld [vmem:[%s382 + $0x8] sm:$0xff]
      %v392 = vld [vmem:[%s382 + $0x10] sm:$0xff]
      %v393 = vld [vmem:[%s382 + $0x18] sm:$0xff]
      %v394 = vld [vmem:[%s382 + $0x20] sm:$0xff]
      %v395 = vld [vmem:[%s382 + $0x28] sm:$0xff]
      %v396 = vld [vmem:[%s382 + $0x30] sm:$0xff]
      %v397 = vld [vmem:[%s382 + $0x38] sm:$0xff]
      %v398 = vld [vmem:[%s382 + $0x40] sm:$0xff]
      %v399 = vld [vmem:[%s382 + $0x48] sm:$0xff]
      %v400 = vld [vmem:[%s382 + $0x50] sm:$0xff]
      %v401 = vld [vmem:[%s382 + $0x58] sm:$0xff]
      %v402 = vld [vmem:[%s382 + $0x60] sm:$0xff]
      %v403 = vld [vmem:[%s382 + $0x68] sm:$0xff]
      %v404 = vld [vmem:[%s382 + $0x70] sm:$0xff]
      %v405 = vld [vmem:[%s382 + $0x78] sm:$0xff]
      %v406 = vld [vmem:[%s1] sm:$0xff]
      %408 = vst [vmem:[#allocation1] ss:$2 sm:$0xff] %v406
      %v409 = vld.sshfl [vmem:[#allocation1] sm:$0xff pattern:$0x75316420]
      %v410 = vld.sshfl [vmem:[#allocation1 + $0x8] sm:$0xff pattern:$0x75316420]
      %vm411 = vcmask 31744
      %v413 = vsel %vm411, %v390, 0
      %v416 = vsel %vm411, %v391, 0
      %v419 = vsel %vm411, %v392, 0
      %v422 = vsel %vm411, %v393, 0
      %v425 = vsel %vm411, %v394, 0
      %v428 = vsel %vm411, %v395, 0
      %v431 = vsel %vm411, %v396, 0
      %v434 = vsel %vm411, %v397, 0
      %v437 = vsel %vm411, %v398, 0
      %v440 = vsel %vm411, %v399, 0
      %v443 = vsel %vm411, %v400, 0
      %v446 = vsel %vm411, %v401, 0
      %v449 = vsel %vm411, %v402, 0
      %v452 = vsel %vm411, %v403, 0
      %v455 = vsel %vm411, %v404, 0
      %v458 = vsel %vm411, %v405, 0
      %vm460 = vcmask 1043456
      %v461 = vsel %vm460, %v409, 0
      %v463 = vsel %vm460, %v410, 0
      %465 = vmatpush.msra.mxu0 0.0
      %466 = vmatpush.msra.mxu0 0.0
      %467 = vmatpush.msra.mxu0 0.0
      %468 = vmatpush.msra.mxu0 0.0
      %469 = vmatpush.msra.mxu0 0.0
      %470 = vmatpush.msra.mxu0 0.0
      %471 = vmatpush.msra.mxu0 0.0
      %472 = vmatpush.msra.mxu0 0.0
      %473 = vmatpush.msra.mxu0 0.0
      %474 = vmatpush.msra.mxu0 0.0
      %475 = vmatpush.msra.mxu0 0.0
      %476 = vmatpush.msra.mxu0 0.0
      %477 = vmatpush.msra.mxu0 0.0
      %478 = vmatpush.msra.mxu0 0.0
      %479 = vmatpush.msra.mxu0 0.0
      %480 = vmatpush.msra.mxu0 %v461
      %481 = vmatmul.f32.gmra.mxu0 %v413
      %v482 = vpop.f32.mrf.mxu0
      %v483 = vadd.f32 0.0, %v482
      %484 = vmatmul.f32.gmra.mxu0 %v416
      %v485 = vpop.f32.mrf.mxu0
      %v486 = vadd.f32 0.0, %v485
      %487 = vmatmul.f32.gmra.mxu0 %v419
      %v488 = vpop.f32.mrf.mxu0
      %v489 = vadd.f32 0.0, %v488
      %490 = vmatmul.f32.gmra.mxu0 %v422
      %v491 = vpop.f32.mrf.mxu0
      %v492 = vadd.f32 0.0, %v491
      %493 = vmatmul.f32.gmra.mxu0 %v425
      %v494 = vpop.f32.mrf.mxu0
      %v495 = vadd.f32 0.0, %v494
      %496 = vmatmul.f32.gmra.mxu0 %v428
      %v497 = vpop.f32.mrf.mxu0
      %v498 = vadd.f32 0.0, %v497
      %499 = vmatmul.f32.gmra.mxu0 %v431
      %v500 = vpop.f32.mrf.mxu0
      %v501 = vadd.f32 0.0, %v500
      %502 = vmatmul.f32.gmra.mxu0 %v434
      %v503 = vpop.f32.mrf.mxu0
      %v504 = vadd.f32 0.0, %v503
      %505 = vmatmul.f32.gmra.mxu0 %v437
      %v506 = vpop.f32.mrf.mxu0
      %v507 = vadd.f32 0.0, %v506
      %508 = vmatmul.f32.gmra.mxu0 %v440
      %v509 = vpop.f32.mrf.mxu0
      %v510 = vadd.f32 0.0, %v509
      %511 = vmatmul.f32.gmra.mxu0 %v443
      %v512 = vpop.f32.mrf.mxu0
      %v513 = vadd.f32 0.0, %v512
      %514 = vmatmul.f32.gmra.mxu0 %v446
      %v515 = vpop.f32.mrf.mxu0
      %v516 = vadd.f32 0.0, %v515
      %517 = vmatmul.f32.gmra.mxu0 %v449
      %v518 = vpop.f32.mrf.mxu0
      %v519 = vadd.f32 0.0, %v518
      %520 = vmatmul.f32.gmra.mxu0 %v452
      %v521 = vpop.f32.mrf.mxu0
      %v522 = vadd.f32 0.0, %v521
      %523 = vmatmul.f32.gmra.mxu0 %v455
      %v524 = vpop.f32.mrf.mxu0
      %v525 = vadd.f32 0.0, %v524
      %526 = vmatmul.f32.gmra.mxu0 %v458
      %v527 = vpop.f32.mrf.mxu0
      %v528 = vadd.f32 0.0, %v527
      %529 = vdwg.mxu0
      %530 = vmatpush.msra.mxu0 0.0
      %531 = vmatpush.msra.mxu0 0.0
      %532 = vmatpush.msra.mxu0 0.0
      %533 = vmatpush.msra.mxu0 0.0
      %534 = vmatpush.msra.mxu0 0.0
      %535 = vmatpush.msra.mxu0 0.0
      %536 = vmatpush.msra.mxu0 0.0
      %537 = vmatpush.msra.mxu0 0.0
      %538 = vmatpush.msra.mxu0 0.0
      %539 = vmatpush.msra.mxu0 0.0
      %540 = vmatpush.msra.mxu0 0.0
      %541 = vmatpush.msra.mxu0 0.0
      %542 = vmatpush.msra.mxu0 0.0
      %543 = vmatpush.msra.mxu0 0.0
      %544 = vmatpush.msra.mxu0 0.0
      %545 = vmatpush.msra.mxu0 %v463
      %546 = vmatmul.f32.gmra.mxu0 %v413
      %v547 = vpop.f32.mrf.mxu0
      %v548 = vadd.f32 0.0, %v547
      %549 = vmatmul.f32.gmra.mxu0 %v416
      %v550 = vpop.f32.mrf.mxu0
      %v551 = vadd.f32 0.0, %v550
      %552 = vmatmul.f32.gmra.mxu0 %v419
      %v553 = vpop.f32.mrf.mxu0
      %v554 = vadd.f32 0.0, %v553
      %555 = vmatmul.f32.gmra.mxu0 %v422
      %v556 = vpop.f32.mrf.mxu0
      %v557 = vadd.f32 0.0, %v556
      %558 = vmatmul.f32.gmra.mxu0 %v425
      %v559 = vpop.f32.mrf.mxu0
      %v560 = vadd.f32 0.0, %v559
      %561 = vmatmul.f32.gmra.mxu0 %v428
      %v562 = vpop.f32.mrf.mxu0
      %v563 = vadd.f32 0.0, %v562
      %564 = vmatmul.f32.gmra.mxu0 %v431
      %v565 = vpop.f32.mrf.mxu0
      %v566 = vadd.f32 0.0, %v565
      %567 = vmatmul.f32.gmra.mxu0 %v434
      %v568 = vpop.f32.mrf.mxu0
      %v569 = vadd.f32 0.0, %v568
      %570 = vmatmul.f32.gmra.mxu0 %v437
      %v571 = vpop.f32.mrf.mxu0
      %v572 = vadd.f32 0.0, %v571
      %573 = vmatmul.f32.gmra.mxu0 %v440
      %v574 = vpop.f32.mrf.mxu0
      %v575 = vadd.f32 0.0, %v574
      %576 = vmatmul.f32.gmra.mxu0 %v443
      %v577 = vpop.f32.mrf.mxu0
      %v578 = vadd.f32 0.0, %v577
      %579 = vmatmul.f32.gmra.mxu0 %v446
      %v580 = vpop.f32.mrf.mxu0
      %v581 = vadd.f32 0.0, %v580
      %582 = vmatmul.f32.gmra.mxu0 %v449
      %v583 = vpop.f32.mrf.mxu0
      %v584 = vadd.f32 0.0, %v583
      %585 = vmatmul.f32.gmra.mxu0 %v452
      %v586 = vpop.f32.mrf.mxu0
      %v587 = vadd.f32 0.0, %v586
      %588 = vmatmul.f32.gmra.mxu0 %v455
      %v589 = vpop.f32.mrf.mxu0
      %v590 = vadd.f32 0.0, %v589
      %591 = vmatmul.f32.gmra.mxu0 %v458
      %v592 = vpop.f32.mrf.mxu0
      %v593 = vadd.f32 0.0, %v592
      %594 = vdwg.mxu0
      %v595 = vld [vmem:[%s2] sm:$0x1]
      %v597 = vperm.slane %v595, 0
      %v599 = vadd.f32 %v483, %v597
      %v600 = vadd.f32 %v486, %v597
      %v601 = vadd.f32 %v489, %v597
      %v602 = vadd.f32 %v492, %v597
      %v603 = vadd.f32 %v495, %v597
      %v604 = vadd.f32 %v498, %v597
      %v605 = vadd.f32 %v501, %v597
      %v606 = vadd.f32 %v504, %v597
      %v607 = vadd.f32 %v507, %v597
      %v608 = vadd.f32 %v510, %v597
      %v609 = vadd.f32 %v513, %v597
      %v610 = vadd.f32 %v516, %v597
      %v611 = vadd.f32 %v519, %v597
      %v612 = vadd.f32 %v522, %v597
      %v613 = vadd.f32 %v525, %v597
      %v614 = vadd.f32 %v528, %v597
      %v615 = vld [vmem:[%s3] sm:$0x1]
      %v616 = vld [vmem:[%s4] sm:$0x1]
      %617 = vadd.xlane.f32.xlu0 %v599
      %v618 = vpop.xlane.xlu0 %617
      %619 = vadd.xlane.f32.xlu0 %v600
      %v620 = vpop.xlane.xlu0 %619
      %621 = vadd.xlane.f32.xlu0 %v601
      %v622 = vpop.xlane.xlu0 %621
      %623 = vadd.xlane.f32.xlu0 %v602
      %v624 = vpop.xlane.xlu0 %623
      %625 = vadd.xlane.f32.xlu0 %v603
      %v626 = vpop.xlane.xlu0 %625
      %627 = vadd.xlane.f32.xlu0 %v604
      %v628 = vpop.xlane.xlu0 %627
      %629 = vadd.xlane.f32.xlu0 %v605
      %v630 = vpop.xlane.xlu0 %629
      %631 = vadd.xlane.f32.xlu0 %v606
      %v632 = vpop.xlane.xlu0 %631
      %633 = vadd.xlane.f32.xlu0 %v607
      %v634 = vpop.xlane.xlu0 %633
      %635 = vadd.xlane.f32.xlu0 %v608
      %v636 = vpop.xlane.xlu0 %635
      %637 = vadd.xlane.f32.xlu0 %v609
      %v638 = vpop.xlane.xlu0 %637
      %639 = vadd.xlane.f32.xlu0 %v610
      %v640 = vpop.xlane.xlu0 %639
      %641 = vadd.xlane.f32.xlu0 %v611
      %v642 = vpop.xlane.xlu0 %641
      %643 = vadd.xlane.f32.xlu0 %v612
      %v644 = vpop.xlane.xlu0 %643
      %645 = vadd.xlane.f32.xlu0 %v613
      %v646 = vpop.xlane.xlu0 %645
      %647 = vadd.xlane.f32.xlu0 %v614
      %v648 = vpop.xlane.xlu0 %647
      %v649 = vmul.f32 %v599, %v599
      %v650 = vmul.f32 %v600, %v600
      %v651 = vmul.f32 %v601, %v601
      %v652 = vmul.f32 %v602, %v602
      %v653 = vmul.f32 %v603, %v603
      %v654 = vmul.f32 %v604, %v604
      %v655 = vmul.f32 %v605, %v605
      %v656 = vmul.f32 %v606, %v606
      %v657 = vmul.f32 %v607, %v607
      %v658 = vmul.f32 %v608, %v608
      %v659 = vmul.f32 %v609, %v609
      %v660 = vmul.f32 %v610, %v610
      %v661 = vmul.f32 %v611, %v611
      %v662 = vmul.f32 %v612, %v612
      %v663 = vmul.f32 %v613, %v613
      %v664 = vmul.f32 %v614, %v614
      %665 = vadd.xlane.f32.xlu0 %v649
      %v666 = vpop.xlane.xlu0 %665
      %667 = vadd.xlane.f32.xlu0 %v650
      %v668 = vpop.xlane.xlu0 %667
      %669 = vadd.xlane.f32.xlu0 %v651
      %v670 = vpop.xlane.xlu0 %669
      %671 = vadd.xlane.f32.xlu0 %v652
      %v672 = vpop.xlane.xlu0 %671
      %673 = vadd.xlane.f32.xlu0 %v653
      %v674 = vpop.xlane.xlu0 %673
      %675 = vadd.xlane.f32.xlu0 %v654
      %v676 = vpop.xlane.xlu0 %675
      %677 = vadd.xlane.f32.xlu0 %v655
      %v678 = vpop.xlane.xlu0 %677
      %679 = vadd.xlane.f32.xlu0 %v656
      %v680 = vpop.xlane.xlu0 %679
      %681 = vadd.xlane.f32.xlu0 %v657
      %v682 = vpop.xlane.xlu0 %681
      %683 = vadd.xlane.f32.xlu0 %v658
      %v684 = vpop.xlane.xlu0 %683
      %685 = vadd.xlane.f32.xlu0 %v659
      %v686 = vpop.xlane.xlu0 %685
      %687 = vadd.xlane.f32.xlu0 %v660
      %v688 = vpop.xlane.xlu0 %687
      %689 = vadd.xlane.f32.xlu0 %v661
      %v690 = vpop.xlane.xlu0 %689
      %691 = vadd.xlane.f32.xlu0 %v662
      %v692 = vpop.xlane.xlu0 %691
      %693 = vadd.xlane.f32.xlu0 %v663
      %v694 = vpop.xlane.xlu0 %693
      %695 = vadd.xlane.f32.xlu0 %v664
      %v696 = vpop.xlane.xlu0 %695
      %v697 = vmul.f32 %v618, 0.03125
      %v698 = vmul.f32 %v620, 0.03125
      %v699 = vmul.f32 %v622, 0.03125
      %v700 = vmul.f32 %v624, 0.03125
      %v701 = vmul.f32 %v626, 0.03125
      %v702 = vmul.f32 %v628, 0.03125
      %v703 = vmul.f32 %v630, 0.03125
      %v704 = vmul.f32 %v632, 0.03125
      %v705 = vmul.f32 %v634, 0.03125
      %v706 = vmul.f32 %v636, 0.03125
      %v707 = vmul.f32 %v638, 0.03125
      %v708 = vmul.f32 %v640, 0.03125
      %v709 = vmul.f32 %v642, 0.03125
      %v710 = vmul.f32 %v644, 0.03125
      %v711 = vmul.f32 %v646, 0.03125
      %v712 = vmul.f32 %v648, 0.03125
      %v713 = vmul.f32 %v666, 0.03125
      %v714 = vmul.f32 %v668, 0.03125
      %v715 = vmul.f32 %v670, 0.03125
      %v716 = vmul.f32 %v672, 0.03125
      %v717 = vmul.f32 %v674, 0.03125
      %v718 = vmul.f32 %v676, 0.03125
      %v719 = vmul.f32 %v678, 0.03125
      %v720 = vmul.f32 %v680, 0.03125
      %v721 = vmul.f32 %v682, 0.03125
      %v722 = vmul.f32 %v684, 0.03125
      %v723 = vmul.f32 %v686, 0.03125
      %v724 = vmul.f32 %v688, 0.03125
      %v725 = vmul.f32 %v690, 0.03125
      %v726 = vmul.f32 %v692, 0.03125
      %v727 = vmul.f32 %v694, 0.03125
      %v728 = vmul.f32 %v696, 0.03125
      %v729 = vmul.f32 %v697, %v697
      %v730 = vmul.f32 %v698, %v698
      %v731 = vmul.f32 %v699, %v699
      %v732 = vmul.f32 %v700, %v700
      %v733 = vmul.f32 %v701, %v701
      %v734 = vmul.f32 %v702, %v702
      %v735 = vmul.f32 %v703, %v703
      %v736 = vmul.f32 %v704, %v704
      %v737 = vmul.f32 %v705, %v705
      %v738 = vmul.f32 %v706, %v706
      %v739 = vmul.f32 %v707, %v707
      %v740 = vmul.f32 %v708, %v708
      %v741 = vmul.f32 %v709, %v709
      %v742 = vmul.f32 %v710, %v710
      %v743 = vmul.f32 %v711, %v711
      %v744 = vmul.f32 %v712, %v712
      %v745 = vsub.f32 %v713, %v729
      %v746 = vsub.f32 %v714, %v730
      %v747 = vsub.f32 %v715, %v731
      %v748 = vsub.f32 %v716, %v732
      %v749 = vsub.f32 %v717, %v733
      %v750 = vsub.f32 %v718, %v734
      %v751 = vsub.f32 %v719, %v735
      %v752 = vsub.f32 %v720, %v736
      %v753 = vsub.f32 %v721, %v737
      %v754 = vsub.f32 %v722, %v738
      %v755 = vsub.f32 %v723, %v739
      %v756 = vsub.f32 %v724, %v740
      %v757 = vsub.f32 %v725, %v741
      %v758 = vsub.f32 %v726, %v742
      %v759 = vsub.f32 %v727, %v743
      %v760 = vsub.f32 %v728, %v744
      %v761 = vadd.f32 %v745, 1e-05
      %v762 = vadd.f32 %v746, 1e-05
      %v763 = vadd.f32 %v747, 1e-05
      %v764 = vadd.f32 %v748, 1e-05
      %v765 = vadd.f32 %v749, 1e-05
      %v766 = vadd.f32 %v750, 1e-05
      %v767 = vadd.f32 %v751, 1e-05
      %v768 = vadd.f32 %v752, 1e-05
      %v769 = vadd.f32 %v753, 1e-05
      %v770 = vadd.f32 %v754, 1e-05
      %v771 = vadd.f32 %v755, 1e-05
      %v772 = vadd.f32 %v756, 1e-05
      %v773 = vadd.f32 %v757, 1e-05
      %v774 = vadd.f32 %v758, 1e-05
      %v775 = vadd.f32 %v759, 1e-05
      %v776 = vadd.f32 %v760, 1e-05
      %v777 = vrsqrt.pop %v761
      %v778 = vmul.f32 %v777, %v761
      %v779 = vmul.f32 %v778, %v777
      %v780 = vmul.f32 0.5, %v779
      %v781 = vsub.f32 1.5, %v780
      %v782 = vmul.f32 %v777, %v781
      %vm783 = vweird.f32 %v761
      %vm784 = vweird.f32 %v777
      %vm785 = vmor %vm783, %vm784
      %v786 = vsel %vm785, %v777, %v782
      %v787 = vrsqrt.pop %v762
      %v788 = vmul.f32 %v787, %v762
      %v789 = vmul.f32 %v788, %v787
      %v790 = vmul.f32 0.5, %v789
      %v791 = vsub.f32 1.5, %v790
      %v792 = vmul.f32 %v787, %v791
      %vm793 = vweird.f32 %v762
      %vm794 = vweird.f32 %v787
      %vm795 = vmor %vm793, %vm794
      %v796 = vsel %vm795, %v787, %v792
      %v797 = vrsqrt.pop %v763
      %v798 = vmul.f32 %v797, %v763
      %v799 = vmul.f32 %v798, %v797
      %v800 = vmul.f32 0.5, %v799
      %v801 = vsub.f32 1.5, %v800
      %v802 = vmul.f32 %v797, %v801
      %vm803 = vweird.f32 %v763
      %vm804 = vweird.f32 %v797
      %vm805 = vmor %vm803, %vm804
      %v806 = vsel %vm805, %v797, %v802
      %v807 = vrsqrt.pop %v764
      %v808 = vmul.f32 %v807, %v764
      %v809 = vmul.f32 %v808, %v807
      %v810 = vmul.f32 0.5, %v809
      %v811 = vsub.f32 1.5, %v810
      %v812 = vmul.f32 %v807, %v811
      %vm813 = vweird.f32 %v764
      %vm814 = vweird.f32 %v807
      %vm815 = vmor %vm813, %vm814
      %v816 = vsel %vm815, %v807, %v812
      %v817 = vrsqrt.pop %v765
      %v818 = vmul.f32 %v817, %v765
      %v819 = vmul.f32 %v818, %v817
      %v820 = vmul.f32 0.5, %v819
      %v821 = vsub.f32 1.5, %v820
      %v822 = vmul.f32 %v817, %v821
      %vm823 = vweird.f32 %v765
      %vm824 = vweird.f32 %v817
      %vm825 = vmor %vm823, %vm824
      %v826 = vsel %vm825, %v817, %v822
      %v827 = vrsqrt.pop %v766
      %v828 = vmul.f32 %v827, %v766
      %v829 = vmul.f32 %v828, %v827
      %v830 = vmul.f32 0.5, %v829
      %v831 = vsub.f32 1.5, %v830
      %v832 = vmul.f32 %v827, %v831
      %vm833 = vweird.f32 %v766
      %vm834 = vweird.f32 %v827
      %vm835 = vmor %vm833, %vm834
      %v836 = vsel %vm835, %v827, %v832
      %v837 = vrsqrt.pop %v767
      %v838 = vmul.f32 %v837, %v767
      %v839 = vmul.f32 %v838, %v837
      %v840 = vmul.f32 0.5, %v839
      %v841 = vsub.f32 1.5, %v840
      %v842 = vmul.f32 %v837, %v841
      %vm843 = vweird.f32 %v767
      %vm844 = vweird.f32 %v837
      %vm845 = vmor %vm843, %vm844
      %v846 = vsel %vm845, %v837, %v842
      %v847 = vrsqrt.pop %v768
      %v848 = vmul.f32 %v847, %v768
      %v849 = vmul.f32 %v848, %v847
      %v850 = vmul.f32 0.5, %v849
      %v851 = vsub.f32 1.5, %v850
      %v852 = vmul.f32 %v847, %v851
      %vm853 = vweird.f32 %v768
      %vm854 = vweird.f32 %v847
      %vm855 = vmor %vm853, %vm854
      %v856 = vsel %vm855, %v847, %v852
      %v857 = vrsqrt.pop %v769
      %v858 = vmul.f32 %v857, %v769
      %v859 = vmul.f32 %v858, %v857
      %v860 = vmul.f32 0.5, %v859
      %v861 = vsub.f32 1.5, %v860
      %v862 = vmul.f32 %v857, %v861
      %vm863 = vweird.f32 %v769
      %vm864 = vweird.f32 %v857
      %vm865 = vmor %vm863, %vm864
      %v866 = vsel %vm865, %v857, %v862
      %v867 = vrsqrt.pop %v770
      %v868 = vmul.f32 %v867, %v770
      %v869 = vmul.f32 %v868, %v867
      %v870 = vmul.f32 0.5, %v869
      %v871 = vsub.f32 1.5, %v870
      %v872 = vmul.f32 %v867, %v871
      %vm873 = vweird.f32 %v770
      %vm874 = vweird.f32 %v867
      %vm875 = vmor %vm873, %vm874
      %v876 = vsel %vm875, %v867, %v872
      %v877 = vrsqrt.pop %v771
      %v878 = vmul.f32 %v877, %v771
      %v879 = vmul.f32 %v878, %v877
      %v880 = vmul.f32 0.5, %v879
      %v881 = vsub.f32 1.5, %v880
      %v882 = vmul.f32 %v877, %v881
      %vm883 = vweird.f32 %v771
      %vm884 = vweird.f32 %v877
      %vm885 = vmor %vm883, %vm884
      %v886 = vsel %vm885, %v877, %v882
      %v887 = vrsqrt.pop %v772
      %v888 = vmul.f32 %v887, %v772
      %v889 = vmul.f32 %v888, %v887
      %v890 = vmul.f32 0.5, %v889
      %v891 = vsub.f32 1.5, %v890
      %v892 = vmul.f32 %v887, %v891
      %vm893 = vweird.f32 %v772
      %vm894 = vweird.f32 %v887
      %vm895 = vmor %vm893, %vm894
      %v896 = vsel %vm895, %v887, %v892
      %v897 = vrsqrt.pop %v773
      %v898 = vmul.f32 %v897, %v773
      %v899 = vmul.f32 %v898, %v897
      %v900 = vmul.f32 0.5, %v899
      %v901 = vsub.f32 1.5, %v900
      %v902 = vmul.f32 %v897, %v901
      %vm903 = vweird.f32 %v773
      %vm904 = vweird.f32 %v897
      %vm905 = vmor %vm903, %vm904
      %v906 = vsel %vm905, %v897, %v902
      %v907 = vrsqrt.pop %v774
      %v908 = vmul.f32 %v907, %v774
      %v909 = vmul.f32 %v908, %v907
      %v910 = vmul.f32 0.5, %v909
      %v911 = vsub.f32 1.5, %v910
      %v912 = vmul.f32 %v907, %v911
      %vm913 = vweird.f32 %v774
      %vm914 = vweird.f32 %v907
      %vm915 = vmor %vm913, %vm914
      %v916 = vsel %vm915, %v907, %v912
      %v917 = vrsqrt.pop %v775
      %v918 = vmul.f32 %v917, %v775
      %v919 = vmul.f32 %v918, %v917
      %v920 = vmul.f32 0.5, %v919
      %v921 = vsub.f32 1.5, %v920
      %v922 = vmul.f32 %v917, %v921
      %vm923 = vweird.f32 %v775
      %vm924 = vweird.f32 %v917
      %vm925 = vmor %vm923, %vm924
      %v926 = vsel %vm925, %v917, %v922
      %v927 = vrsqrt.pop %v776
      %v928 = vmul.f32 %v927, %v776
      %v929 = vmul.f32 %v928, %v927
      %v930 = vmul.f32 0.5, %v929
      %v931 = vsub.f32 1.5, %v930
      %v932 = vmul.f32 %v927, %v931
      %vm933 = vweird.f32 %v776
      %vm934 = vweird.f32 %v927
      %vm935 = vmor %vm933, %vm934
      %v936 = vsel %vm935, %v927, %v932
      %v938 = vperm.slane %v615, 0
      %v940 = vmul.f32 %v938, %v786
      %v941 = vmul.f32 %v938, %v796
      %v942 = vmul.f32 %v938, %v806
      %v943 = vmul.f32 %v938, %v816
      %v944 = vmul.f32 %v938, %v826
      %v945 = vmul.f32 %v938, %v836
      %v946 = vmul.f32 %v938, %v846
      %v947 = vmul.f32 %v938, %v856
      %v948 = vmul.f32 %v938, %v866
      %v949 = vmul.f32 %v938, %v876
      %v950 = vmul.f32 %v938, %v886
      %v951 = vmul.f32 %v938, %v896
      %v952 = vmul.f32 %v938, %v906
      %v953 = vmul.f32 %v938, %v916
      %v954 = vmul.f32 %v938, %v926
      %v955 = vmul.f32 %v938, %v936
      %v956 = vsub.f32 %v599, %v697
      %v957 = vsub.f32 %v600, %v698
      %v958 = vsub.f32 %v601, %v699
      %v959 = vsub.f32 %v602, %v700
      %v960 = vsub.f32 %v603, %v701
      %v961 = vsub.f32 %v604, %v702
      %v962 = vsub.f32 %v605, %v703
      %v963 = vsub.f32 %v606, %v704
      %v964 = vsub.f32 %v607, %v705
      %v965 = vsub.f32 %v608, %v706
      %v966 = vsub.f32 %v609, %v707
      %v967 = vsub.f32 %v610, %v708
      %v968 = vsub.f32 %v611, %v709
      %v969 = vsub.f32 %v612, %v710
      %v970 = vsub.f32 %v613, %v711
      %v971 = vsub.f32 %v614, %v712
      %v972 = vmul.f32 %v956, %v940
      %v973 = vmul.f32 %v957, %v941
      %v974 = vmul.f32 %v958, %v942
      %v975 = vmul.f32 %v959, %v943
      %v976 = vmul.f32 %v960, %v944
      %v977 = vmul.f32 %v961, %v945
      %v978 = vmul.f32 %v962, %v946
      %v979 = vmul.f32 %v963, %v947
      %v980 = vmul.f32 %v964, %v948
      %v981 = vmul.f32 %v965, %v949
      %v982 = vmul.f32 %v966, %v950
      %v983 = vmul.f32 %v967, %v951
      %v984 = vmul.f32 %v968, %v952
      %v985 = vmul.f32 %v969, %v953
      %v986 = vmul.f32 %v970, %v954
      %v987 = vmul.f32 %v971, %v955
      %v989 = vperm.slane %v616, 0
      %v991 = vadd.f32 %v972, %v989
      %v992 = vadd.f32 %v973, %v989
      %v993 = vadd.f32 %v974, %v989
      %v994 = vadd.f32 %v975, %v989
      %v995 = vadd.f32 %v976, %v989
      %v996 = vadd.f32 %v977, %v989
      %v997 = vadd.f32 %v978, %v989
      %v998 = vadd.f32 %v979, %v989
      %v999 = vadd.f32 %v980, %v989
      %v1000 = vadd.f32 %v981, %v989
      %v1001 = vadd.f32 %v982, %v989
      %v1002 = vadd.f32 %v983, %v989
      %v1003 = vadd.f32 %v984, %v989
      %v1004 = vadd.f32 %v985, %v989
      %v1005 = vadd.f32 %v986, %v989
      %v1006 = vadd.f32 %v987, %v989
      %v1007 = vadd.f32 %v991, %v548
      %v1008 = vadd.f32 %v992, %v551
      %v1009 = vadd.f32 %v993, %v554
      %v1010 = vadd.f32 %v994, %v557
      %v1011 = vadd.f32 %v995, %v560
      %v1012 = vadd.f32 %v996, %v563
      %v1013 = vadd.f32 %v997, %v566
      %v1014 = vadd.f32 %v998, %v569
      %v1015 = vadd.f32 %v999, %v572
      %v1016 = vadd.f32 %v1000, %v575
      %v1017 = vadd.f32 %v1001, %v578
      %v1018 = vadd.f32 %v1002, %v581
      %v1019 = vadd.f32 %v1003, %v584
      %v1020 = vadd.f32 %v1004, %v587
      %v1021 = vadd.f32 %v1005, %v590
      %v1022 = vadd.f32 %v1006, %v593
      %v1023 = vxor.u32 %v1007, 2147483648
      %v1024 = vxor.u32 %v1008, 2147483648
      %v1025 = vxor.u32 %v1009, 2147483648
      %v1026 = vxor.u32 %v1010, 2147483648
      %v1027 = vxor.u32 %v1011, 2147483648
      %v1028 = vxor.u32 %v1012, 2147483648
      %v1029 = vxor.u32 %v1013, 2147483648
      %v1030 = vxor.u32 %v1014, 2147483648
      %v1031 = vxor.u32 %v1015, 2147483648
      %v1032 = vxor.u32 %v1016, 2147483648
      %v1033 = vxor.u32 %v1017, 2147483648
      %v1034 = vxor.u32 %v1018, 2147483648
      %v1035 = vxor.u32 %v1019, 2147483648
      %v1036 = vxor.u32 %v1020, 2147483648
      %v1037 = vxor.u32 %v1021, 2147483648
      %v1038 = vxor.u32 %v1022, 2147483648
      %v1039 = vmul.f32 %v1023, 1.442695
      %v1040 = vpow.pop %v1039
      %v1041 = vmul.f32 %v1024, 1.442695
      %v1042 = vpow.pop %v1041
      %v1043 = vmul.f32 %v1025, 1.442695
      %v1044 = vpow.pop %v1043
      %v1045 = vmul.f32 %v1026, 1.442695
      %v1046 = vpow.pop %v1045
      %v1047 = vmul.f32 %v1027, 1.442695
      %v1048 = vpow.pop %v1047
      %v1049 = vmul.f32 %v1028, 1.442695
      %v1050 = vpow.pop %v1049
      %v1051 = vmul.f32 %v1029, 1.442695
      %v1052 = vpow.pop %v1051
      %v1053 = vmul.f32 %v1030, 1.442695
      %v1054 = vpow.pop %v1053
      %v1055 = vmul.f32 %v1031, 1.442695
      %v1056 = vpow.pop %v1055
      %v1057 = vmul.f32 %v1032, 1.442695
      %v1058 = vpow.pop %v1057
      %v1059 = vmul.f32 %v1033, 1.442695
      %v1060 = vpow.pop %v1059
      %v1061 = vmul.f32 %v1034, 1.442695
      %v1062 = vpow.pop %v1061
      %v1063 = vmul.f32 %v1035, 1.442695
      %v1064 = vpow.pop %v1063
      %v1065 = vmul.f32 %v1036, 1.442695
      %v1066 = vpow.pop %v1065
      %v1067 = vmul.f32 %v1037, 1.442695
      %v1068 = vpow.pop %v1067
      %v1069 = vmul.f32 %v1038, 1.442695
      %v1070 = vpow.pop %v1069
      %v1071 = vadd.f32 %v1040, 1.0
      %v1072 = vadd.f32 %v1042, 1.0
      %v1073 = vadd.f32 %v1044, 1.0
      %v1074 = vadd.f32 %v1046, 1.0
      %v1075 = vadd.f32 %v1048, 1.0
      %v1076 = vadd.f32 %v1050, 1.0
      %v1077 = vadd.f32 %v1052, 1.0
      %v1078 = vadd.f32 %v1054, 1.0
      %v1079 = vadd.f32 %v1056, 1.0
      %v1080 = vadd.f32 %v1058, 1.0
      %v1081 = vadd.f32 %v1060, 1.0
      %v1082 = vadd.f32 %v1062, 1.0
      %v1083 = vadd.f32 %v1064, 1.0
      %v1084 = vadd.f32 %v1066, 1.0
      %v1085 = vadd.f32 %v1068, 1.0
      %v1086 = vadd.f32 %v1070, 1.0
      %v1087 = vrcp.pop %v1071
      %v1088 = vmul.f32 %v1071, %v1087
      %v1089 = vsub.f32 1.0, %v1088
      %v1090 = vmul.f32 %v1087, %v1089
      %v1091 = vadd.f32 %v1087, %v1090
      %vm1092 = vweird.f32 %v1071
      %vm1093 = vweird.f32 %v1087
      %vm1094 = vmor %vm1092, %vm1093
      %v1095 = vsel %vm1094, %v1087, %v1091
      %v1096 = vand.u32 2147483647, %v1071
      %vm1097 = vcmp.eq.f32.partialorder %v1096, 8.507059e+37
      %v1098 = vand.u32 %v1071, 2147483648
      %v1099 = vor.u32 1.1754944e-38, %v1098
      %v1100 = vsel %vm1097, %v1099, %v1095
      %v1101 = vmul.f32 1.0, %v1100
      %v1102 = vrcp.pop %v1072
      %v1103 = vmul.f32 %v1072, %v1102
      %v1104 = vsub.f32 1.0, %v1103
      %v1105 = vmul.f32 %v1102, %v1104
      %v1106 = vadd.f32 %v1102, %v1105
      %vm1107 = vweird.f32 %v1072
      %vm1108 = vweird.f32 %v1102
      %vm1109 = vmor %vm1107, %vm1108
      %v1110 = vsel %vm1109, %v1102, %v1106
      %v1111 = vand.u32 2147483647, %v1072
      %vm1112 = vcmp.eq.f32.partialorder %v1111, 8.507059e+37
      %v1113 = vand.u32 %v1072, 2147483648
      %v1114 = vor.u32 1.1754944e-38, %v1113
      %v1115 = vsel %vm1112, %v1114, %v1110
      %v1116 = vmul.f32 1.0, %v1115
      %v1117 = vrcp.pop %v1073
      %v1118 = vmul.f32 %v1073, %v1117
      %v1119 = vsub.f32 1.0, %v1118
      %v1120 = vmul.f32 %v1117, %v1119
      %v1121 = vadd.f32 %v1117, %v1120
      %vm1122 = vweird.f32 %v1073
      %vm1123 = vweird.f32 %v1117
      %vm1124 = vmor %vm1122, %vm1123
      %v1125 = vsel %vm1124, %v1117, %v1121
      %v1126 = vand.u32 2147483647, %v1073
      %vm1127 = vcmp.eq.f32.partialorder %v1126, 8.507059e+37
      %v1128 = vand.u32 %v1073, 2147483648
      %v1129 = vor.u32 1.1754944e-38, %v1128
      %v1130 = vsel %vm1127, %v1129, %v1125
      %v1131 = vmul.f32 1.0, %v1130
      %v1132 = vrcp.pop %v1074
      %v1133 = vmul.f32 %v1074, %v1132
      %v1134 = vsub.f32 1.0, %v1133
      %v1135 = vmul.f32 %v1132, %v1134
      %v1136 = vadd.f32 %v1132, %v1135
      %vm1137 = vweird.f32 %v1074
      %vm1138 = vweird.f32 %v1132
      %vm1139 = vmor %vm1137, %vm1138
      %v1140 = vsel %vm1139, %v1132, %v1136
      %v1141 = vand.u32 2147483647, %v1074
      %vm1142 = vcmp.eq.f32.partialorder %v1141, 8.507059e+37
      %v1143 = vand.u32 %v1074, 2147483648
      %v1144 = vor.u32 1.1754944e-38, %v1143
      %v1145 = vsel %vm1142, %v1144, %v1140
      %v1146 = vmul.f32 1.0, %v1145
      %v1147 = vrcp.pop %v1075
      %v1148 = vmul.f32 %v1075, %v1147
      %v1149 = vsub.f32 1.0, %v1148
      %v1150 = vmul.f32 %v1147, %v1149
      %v1151 = vadd.f32 %v1147, %v1150
      %vm1152 = vweird.f32 %v1075
      %vm1153 = vweird.f32 %v1147
      %vm1154 = vmor %vm1152, %vm1153
      %v1155 = vsel %vm1154, %v1147, %v1151
      %v1156 = vand.u32 2147483647, %v1075
      %vm1157 = vcmp.eq.f32.partialorder %v1156, 8.507059e+37
      %v1158 = vand.u32 %v1075, 2147483648
      %v1159 = vor.u32 1.1754944e-38, %v1158
      %v1160 = vsel %vm1157, %v1159, %v1155
      %v1161 = vmul.f32 1.0, %v1160
      %v1162 = vrcp.pop %v1076
      %v1163 = vmul.f32 %v1076, %v1162
      %v1164 = vsub.f32 1.0, %v1163
      %v1165 = vmul.f32 %v1162, %v1164
      %v1166 = vadd.f32 %v1162, %v1165
      %vm1167 = vweird.f32 %v1076
      %vm1168 = vweird.f32 %v1162
      %vm1169 = vmor %vm1167, %vm1168
      %v1170 = vsel %vm1169, %v1162, %v1166
      %v1171 = vand.u32 2147483647, %v1076
      %vm1172 = vcmp.eq.f32.partialorder %v1171, 8.507059e+37
      %v1173 = vand.u32 %v1076, 2147483648
      %v1174 = vor.u32 1.1754944e-38, %v1173
      %v1175 = vsel %vm1172, %v1174, %v1170
      %v1176 = vmul.f32 1.0, %v1175
      %v1177 = vrcp.pop %v1077
      %v1178 = vmul.f32 %v1077, %v1177
      %v1179 = vsub.f32 1.0, %v1178
      %v1180 = vmul.f32 %v1177, %v1179
      %v1181 = vadd.f32 %v1177, %v1180
      %vm1182 = vweird.f32 %v1077
      %vm1183 = vweird.f32 %v1177
      %vm1184 = vmor %vm1182, %vm1183
      %v1185 = vsel %vm1184, %v1177, %v1181
      %v1186 = vand.u32 2147483647, %v1077
      %vm1187 = vcmp.eq.f32.partialorder %v1186, 8.507059e+37
      %v1188 = vand.u32 %v1077, 2147483648
      %v1189 = vor.u32 1.1754944e-38, %v1188
      %v1190 = vsel %vm1187, %v1189, %v1185
      %v1191 = vmul.f32 1.0, %v1190
      %v1192 = vrcp.pop %v1078
      %v1193 = vmul.f32 %v1078, %v1192
      %v1194 = vsub.f32 1.0, %v1193
      %v1195 = vmul.f32 %v1192, %v1194
      %v1196 = vadd.f32 %v1192, %v1195
      %vm1197 = vweird.f32 %v1078
      %vm1198 = vweird.f32 %v1192
      %vm1199 = vmor %vm1197, %vm1198
      %v1200 = vsel %vm1199, %v1192, %v1196
      %v1201 = vand.u32 2147483647, %v1078
      %vm1202 = vcmp.eq.f32.partialorder %v1201, 8.507059e+37
      %v1203 = vand.u32 %v1078, 2147483648
      %v1204 = vor.u32 1.1754944e-38, %v1203
      %v1205 = vsel %vm1202, %v1204, %v1200
      %v1206 = vmul.f32 1.0, %v1205
      %v1207 = vrcp.pop %v1079
      %v1208 = vmul.f32 %v1079, %v1207
      %v1209 = vsub.f32 1.0, %v1208
      %v1210 = vmul.f32 %v1207, %v1209
      %v1211 = vadd.f32 %v1207, %v1210
      %vm1212 = vweird.f32 %v1079
      %vm1213 = vweird.f32 %v1207
      %vm1214 = vmor %vm1212, %vm1213
      %v1215 = vsel %vm1214, %v1207, %v1211
      %v1216 = vand.u32 2147483647, %v1079
      %vm1217 = vcmp.eq.f32.partialorder %v1216, 8.507059e+37
      %v1218 = vand.u32 %v1079, 2147483648
      %v1219 = vor.u32 1.1754944e-38, %v1218
      %v1220 = vsel %vm1217, %v1219, %v1215
      %v1221 = vmul.f32 1.0, %v1220
      %v1222 = vrcp.pop %v1080
      %v1223 = vmul.f32 %v1080, %v1222
      %v1224 = vsub.f32 1.0, %v1223
      %v1225 = vmul.f32 %v1222, %v1224
      %v1226 = vadd.f32 %v1222, %v1225
      %vm1227 = vweird.f32 %v1080
      %vm1228 = vweird.f32 %v1222
      %vm1229 = vmor %vm1227, %vm1228
      %v1230 = vsel %vm1229, %v1222, %v1226
      %v1231 = vand.u32 2147483647, %v1080
      %vm1232 = vcmp.eq.f32.partialorder %v1231, 8.507059e+37
      %v1233 = vand.u32 %v1080, 2147483648
      %v1234 = vor.u32 1.1754944e-38, %v1233
      %v1235 = vsel %vm1232, %v1234, %v1230
      %v1236 = vmul.f32 1.0, %v1235
      %v1237 = vrcp.pop %v1081
      %v1238 = vmul.f32 %v1081, %v1237
      %v1239 = vsub.f32 1.0, %v1238
      %v1240 = vmul.f32 %v1237, %v1239
      %v1241 = vadd.f32 %v1237, %v1240
      %vm1242 = vweird.f32 %v1081
      %vm1243 = vweird.f32 %v1237
      %vm1244 = vmor %vm1242, %vm1243
      %v1245 = vsel %vm1244, %v1237, %v1241
      %v1246 = vand.u32 2147483647, %v1081
      %vm1247 = vcmp.eq.f32.partialorder %v1246, 8.507059e+37
      %v1248 = vand.u32 %v1081, 2147483648
      %v1249 = vor.u32 1.1754944e-38, %v1248
      %v1250 = vsel %vm1247, %v1249, %v1245
      %v1251 = vmul.f32 1.0, %v1250
      %v1252 = vrcp.pop %v1082
      %v1253 = vmul.f32 %v1082, %v1252
      %v1254 = vsub.f32 1.0, %v1253
      %v1255 = vmul.f32 %v1252, %v1254
      %v1256 = vadd.f32 %v1252, %v1255
      %vm1257 = vweird.f32 %v1082
      %vm1258 = vweird.f32 %v1252
      %vm1259 = vmor %vm1257, %vm1258
      %v1260 = vsel %vm1259, %v1252, %v1256
      %v1261 = vand.u32 2147483647, %v1082
      %vm1262 = vcmp.eq.f32.partialorder %v1261, 8.507059e+37
      %v1263 = vand.u32 %v1082, 2147483648
      %v1264 = vor.u32 1.1754944e-38, %v1263
      %v1265 = vsel %vm1262, %v1264, %v1260
      %v1266 = vmul.f32 1.0, %v1265
      %v1267 = vrcp.pop %v1083
      %v1268 = vmul.f32 %v1083, %v1267
      %v1269 = vsub.f32 1.0, %v1268
      %v1270 = vmul.f32 %v1267, %v1269
      %v1271 = vadd.f32 %v1267, %v1270
      %vm1272 = vweird.f32 %v1083
      %vm1273 = vweird.f32 %v1267
      %vm1274 = vmor %vm1272, %vm1273
      %v1275 = vsel %vm1274, %v1267, %v1271
      %v1276 = vand.u32 2147483647, %v1083
      %vm1277 = vcmp.eq.f32.partialorder %v1276, 8.507059e+37
      %v1278 = vand.u32 %v1083, 2147483648
      %v1279 = vor.u32 1.1754944e-38, %v1278
      %v1280 = vsel %vm1277, %v1279, %v1275
      %v1281 = vmul.f32 1.0, %v1280
      %v1282 = vrcp.pop %v1084
      %v1283 = vmul.f32 %v1084, %v1282
      %v1284 = vsub.f32 1.0, %v1283
      %v1285 = vmul.f32 %v1282, %v1284
      %v1286 = vadd.f32 %v1282, %v1285
      %vm1287 = vweird.f32 %v1084
      %vm1288 = vweird.f32 %v1282
      %vm1289 = vmor %vm1287, %vm1288
      %v1290 = vsel %vm1289, %v1282, %v1286
      %v1291 = vand.u32 2147483647, %v1084
      %vm1292 = vcmp.eq.f32.partialorder %v1291, 8.507059e+37
      %v1293 = vand.u32 %v1084, 2147483648
      %v1294 = vor.u32 1.1754944e-38, %v1293
      %v1295 = vsel %vm1292, %v1294, %v1290
      %v1296 = vmul.f32 1.0, %v1295
      %v1297 = vrcp.pop %v1085
      %v1298 = vmul.f32 %v1085, %v1297
      %v1299 = vsub.f32 1.0, %v1298
      %v1300 = vmul.f32 %v1297, %v1299
      %v1301 = vadd.f32 %v1297, %v1300
      %vm1302 = vweird.f32 %v1085
      %vm1303 = vweird.f32 %v1297
      %vm1304 = vmor %vm1302, %vm1303
      %v1305 = vsel %vm1304, %v1297, %v1301
      %v1306 = vand.u32 2147483647, %v1085
      %vm1307 = vcmp.eq.f32.partialorder %v1306, 8.507059e+37
      %v1308 = vand.u32 %v1085, 2147483648
      %v1309 = vor.u32 1.1754944e-38, %v1308
      %v1310 = vsel %vm1307, %v1309, %v1305
      %v1311 = vmul.f32 1.0, %v1310
      %v1312 = vrcp.pop %v1086
      %v1313 = vmul.f32 %v1086, %v1312
      %v1314 = vsub.f32 1.0, %v1313
      %v1315 = vmul.f32 %v1312, %v1314
      %v1316 = vadd.f32 %v1312, %v1315
      %vm1317 = vweird.f32 %v1086
      %vm1318 = vweird.f32 %v1312
      %vm1319 = vmor %vm1317, %vm1318
      %v1320 = vsel %vm1319, %v1312, %v1316
      %v1321 = vand.u32 2147483647, %v1086
      %vm1322 = vcmp.eq.f32.partialorder %v1321, 8.507059e+37
      %v1323 = vand.u32 %v1086, 2147483648
      %v1324 = vor.u32 1.1754944e-38, %v1323
      %v1325 = vsel %vm1322, %v1324, %v1320
      %v1326 = vmul.f32 1.0, %v1325
      %v1327 = vmul.f32 %v1007, %v1101
      %v1328 = vmul.f32 %v1008, %v1116
      %v1329 = vmul.f32 %v1009, %v1131
      %v1330 = vmul.f32 %v1010, %v1146
      %v1331 = vmul.f32 %v1011, %v1161
      %v1332 = vmul.f32 %v1012, %v1176
      %v1333 = vmul.f32 %v1013, %v1191
      %v1334 = vmul.f32 %v1014, %v1206
      %v1335 = vmul.f32 %v1015, %v1221
      %v1336 = vmul.f32 %v1016, %v1236
      %v1337 = vmul.f32 %v1017, %v1251
      %v1338 = vmul.f32 %v1018, %v1266
      %v1339 = vmul.f32 %v1019, %v1281
      %v1340 = vmul.f32 %v1020, %v1296
      %v1341 = vmul.f32 %v1021, %v1311
      %v1342 = vmul.f32 %v1022, %v1326
      %v1343 = vld [vmem:[%s5] sm:$0xff]
      %v1344 = vld [vmem:[%s5 + $0x8] sm:$0xff]
      %v1345 = vld [vmem:[%s5 + $0x10] sm:$0xff]
      %v1346 = vld [vmem:[%s5 + $0x18] sm:$0xff]
      %v1347 = vld [vmem:[%s5 + $0x20] sm:$0xff]
      %v1348 = vld [vmem:[%s5 + $0x28] sm:$0xff]
      %v1349 = vld [vmem:[%s5 + $0x30] sm:$0xff]
      %v1350 = vld [vmem:[%s5 + $0x38] sm:$0xff]
      %v1351 = vld [vmem:[%s5 + $0x40] sm:$0xff]
      %v1352 = vld [vmem:[%s5 + $0x48] sm:$0xff]
      %v1353 = vld [vmem:[%s5 + $0x50] sm:$0xff]
      %v1354 = vld [vmem:[%s5 + $0x58] sm:$0xff]
      %v1355 = vld [vmem:[%s5 + $0x60] sm:$0xff]
      %v1356 = vld [vmem:[%s5 + $0x68] sm:$0xff]
      %v1357 = vld [vmem:[%s5 + $0x70] sm:$0xff]
      %v1358 = vld [vmem:[%s5 + $0x78] sm:$0xff]
      %v1359 = vld [vmem:[%s6] sm:$0x1]
      %v1361 = vperm.slane %v1359, 0
      %1363 = vmatpush.msra.mxu0 %v1358
      %1364 = vmatpush.msra.mxu0 %v1357
      %1365 = vmatpush.msra.mxu0 %v1356
      %1366 = vmatpush.msra.mxu0 %v1355
      %1367 = vmatpush.msra.mxu0 %v1354
      %1368 = vmatpush.msra.mxu0 %v1353
      %1369 = vmatpush.msra.mxu0 %v1352
      %1370 = vmatpush.msra.mxu0 %v1351
      %1371 = vmatpush.msra.mxu0 %v1350
      %1372 = vmatpush.msra.mxu0 %v1349
      %1373 = vmatpush.msra.mxu0 %v1348
      %1374 = vmatpush.msra.mxu0 %v1347
      %1375 = vmatpush.msra.mxu0 %v1346
      %1376 = vmatpush.msra.mxu0 %v1345
      %1377 = vmatpush.msra.mxu0 %v1344
      %1378 = vmatpush.msra.mxu0 %v1343
      %1379 = vmatmul.f32.gmra.mxu0 %v1327
      %v1380 = vpop.f32.mrf.mxu0
      %v1381 = vadd.f32 %v1361, %v1380
      %1382 = vmatmul.f32.gmra.mxu0 %v1328
      %v1383 = vpop.f32.mrf.mxu0
      %v1384 = vadd.f32 %v1361, %v1383
      %1385 = vmatmul.f32.gmra.mxu0 %v1329
      %v1386 = vpop.f32.mrf.mxu0
      %v1387 = vadd.f32 %v1361, %v1386
      %1388 = vmatmul.f32.gmra.mxu0 %v1330
      %v1389 = vpop.f32.mrf.mxu0
      %v1390 = vadd.f32 %v1361, %v1389
      %1391 = vmatmul.f32.gmra.mxu0 %v1331
      %v1392 = vpop.f32.mrf.mxu0
      %v1393 = vadd.f32 %v1361, %v1392
      %1394 = vmatmul.f32.gmra.mxu0 %v1332
      %v1395 = vpop.f32.mrf.mxu0
      %v1396 = vadd.f32 %v1361, %v1395
      %1397 = vmatmul.f32.gmra.mxu0 %v1333
      %v1398 = vpop.f32.mrf.mxu0
      %v1399 = vadd.f32 %v1361, %v1398
      %1400 = vmatmul.f32.gmra.mxu0 %v1334
      %v1401 = vpop.f32.mrf.mxu0
      %v1402 = vadd.f32 %v1361, %v1401
      %1403 = vmatmul.f32.gmra.mxu0 %v1335
      %v1404 = vpop.f32.mrf.mxu0
      %v1405 = vadd.f32 %v1361, %v1404
      %1406 = vmatmul.f32.gmra.mxu0 %v1336
      %v1407 = vpop.f32.mrf.mxu0
      %v1408 = vadd.f32 %v1361, %v1407
      %1409 = vmatmul.f32.gmra.mxu0 %v1337
      %v1410 = vpop.f32.mrf.mxu0
      %v1411 = vadd.f32 %v1361, %v1410
      %1412 = vmatmul.f32.gmra.mxu0 %v1338
      %v1413 = vpop.f32.mrf.mxu0
      %v1414 = vadd.f32 %v1361, %v1413
      %1415 = vmatmul.f32.gmra.mxu0 %v1339
      %v1416 = vpop.f32.mrf.mxu0
      %v1417 = vadd.f32 %v1361, %v1416
      %1418 = vmatmul.f32.gmra.mxu0 %v1340
      %v1419 = vpop.f32.mrf.mxu0
      %v1420 = vadd.f32 %v1361, %v1419
      %1421 = vmatmul.f32.gmra.mxu0 %v1341
      %v1422 = vpop.f32.mrf.mxu0
      %v1423 = vadd.f32 %v1361, %v1422
      %1424 = vmatmul.f32.gmra.mxu0 %v1342
      %v1425 = vpop.f32.mrf.mxu0
      %v1426 = vadd.f32 %v1361, %v1425
      %1427 = vdwg.mxu0
      %v1428 = vld [vmem:[%s7] sm:$0x1]
      %v1429 = vld [vmem:[%s8] sm:$0x1]
      %1430 = vadd.xlane.f32.xlu0 %v1381
      %v1431 = vpop.xlane.xlu0 %1430
      %1432 = vadd.xlane.f32.xlu0 %v1384
      %v1433 = vpop.xlane.xlu0 %1432
      %1434 = vadd.xlane.f32.xlu0 %v1387
      %v1435 = vpop.xlane.xlu0 %1434
      %1436 = vadd.xlane.f32.xlu0 %v1390
      %v1437 = vpop.xlane.xlu0 %1436
      %1438 = vadd.xlane.f32.xlu0 %v1393
      %v1439 = vpop.xlane.xlu0 %1438
      %1440 = vadd.xlane.f32.xlu0 %v1396
      %v1441 = vpop.xlane.xlu0 %1440
      %1442 = vadd.xlane.f32.xlu0 %v1399
      %v1443 = vpop.xlane.xlu0 %1442
      %1444 = vadd.xlane.f32.xlu0 %v1402
      %v1445 = vpop.xlane.xlu0 %1444
      %1446 = vadd.xlane.f32.xlu0 %v1405
      %v1447 = vpop.xlane.xlu0 %1446
      %1448 = vadd.xlane.f32.xlu0 %v1408
      %v1449 = vpop.xlane.xlu0 %1448
      %1450 = vadd.xlane.f32.xlu0 %v1411
      %v1451 = vpop.xlane.xlu0 %1450
      %1452 = vadd.xlane.f32.xlu0 %v1414
      %v1453 = vpop.xlane.xlu0 %1452
      %1454 = vadd.xlane.f32.xlu0 %v1417
      %v1455 = vpop.xlane.xlu0 %1454
      %1456 = vadd.xlane.f32.xlu0 %v1420
      %v1457 = vpop.xlane.xlu0 %1456
      %1458 = vadd.xlane.f32.xlu0 %v1423
      %v1459 = vpop.xlane.xlu0 %1458
      %1460 = vadd.xlane.f32.xlu0 %v1426
      %v1461 = vpop.xlane.xlu0 %1460
      %v1462 = vmul.f32 %v1381, %v1381
      %v1463 = vmul.f32 %v1384, %v1384
      %v1464 = vmul.f32 %v1387, %v1387
      %v1465 = vmul.f32 %v1390, %v1390
      %v1466 = vmul.f32 %v1393, %v1393
      %v1467 = vmul.f32 %v1396, %v1396
      %v1468 = vmul.f32 %v1399, %v1399
      %v1469 = vmul.f32 %v1402, %v1402
      %v1470 = vmul.f32 %v1405, %v1405
      %v1471 = vmul.f32 %v1408, %v1408
      %v1472 = vmul.f32 %v1411, %v1411
      %v1473 = vmul.f32 %v1414, %v1414
      %v1474 = vmul.f32 %v1417, %v1417
      %v1475 = vmul.f32 %v1420, %v1420
      %v1476 = vmul.f32 %v1423, %v1423
      %v1477 = vmul.f32 %v1426, %v1426
      %1478 = vadd.xlane.f32.xlu0 %v1462
      %v1479 = vpop.xlane.xlu0 %1478
      %1480 = vadd.xlane.f32.xlu0 %v1463
      %v1481 = vpop.xlane.xlu0 %1480
      %1482 = vadd.xlane.f32.xlu0 %v1464
      %v1483 = vpop.xlane.xlu0 %1482
      %1484 = vadd.xlane.f32.xlu0 %v1465
      %v1485 = vpop.xlane.xlu0 %1484
      %1486 = vadd.xlane.f32.xlu0 %v1466
      %v1487 = vpop.xlane.xlu0 %1486
      %1488 = vadd.xlane.f32.xlu0 %v1467
      %v1489 = vpop.xlane.xlu0 %1488
      %1490 = vadd.xlane.f32.xlu0 %v1468
      %v1491 = vpop.xlane.xlu0 %1490
      %1492 = vadd.xlane.f32.xlu0 %v1469
      %v1493 = vpop.xlane.xlu0 %1492
      %1494 = vadd.xlane.f32.xlu0 %v1470
      %v1495 = vpop.xlane.xlu0 %1494
      %1496 = vadd.xlane.f32.xlu0 %v1471
      %v1497 = vpop.xlane.xlu0 %1496
      %1498 = vadd.xlane.f32.xlu0 %v1472
      %v1499 = vpop.xlane.xlu0 %1498
      %1500 = vadd.xlane.f32.xlu0 %v1473
      %v1501 = vpop.xlane.xlu0 %1500
      %1502 = vadd.xlane.f32.xlu0 %v1474
      %v1503 = vpop.xlane.xlu0 %1502
      %1504 = vadd.xlane.f32.xlu0 %v1475
      %v1505 = vpop.xlane.xlu0 %1504
      %1506 = vadd.xlane.f32.xlu0 %v1476
      %v1507 = vpop.xlane.xlu0 %1506
      %1508 = vadd.xlane.f32.xlu0 %v1477
      %v1509 = vpop.xlane.xlu0 %1508
      %v1510 = vmul.f32 %v1431, 0.03125
      %v1511 = vmul.f32 %v1433, 0.03125
      %v1512 = vmul.f32 %v1435, 0.03125
      %v1513 = vmul.f32 %v1437, 0.03125
      %v1514 = vmul.f32 %v1439, 0.03125
      %v1515 = vmul.f32 %v1441, 0.03125
      %v1516 = vmul.f32 %v1443, 0.03125
      %v1517 = vmul.f32 %v1445, 0.03125
      %v1518 = vmul.f32 %v1447, 0.03125
      %v1519 = vmul.f32 %v1449, 0.03125
      %v1520 = vmul.f32 %v1451, 0.03125
      %v1521 = vmul.f32 %v1453, 0.03125
      %v1522 = vmul.f32 %v1455, 0.03125
      %v1523 = vmul.f32 %v1457, 0.03125
      %v1524 = vmul.f32 %v1459, 0.03125
      %v1525 = vmul.f32 %v1461, 0.03125
      %v1526 = vmul.f32 %v1479, 0.03125
      %v1527 = vmul.f32 %v1481, 0.03125
      %v1528 = vmul.f32 %v1483, 0.03125
      %v1529 = vmul.f32 %v1485, 0.03125
      %v1530 = vmul.f32 %v1487, 0.03125
      %v1531 = vmul.f32 %v1489, 0.03125
      %v1532 = vmul.f32 %v1491, 0.03125
      %v1533 = vmul.f32 %v1493, 0.03125
      %v1534 = vmul.f32 %v1495, 0.03125
      %v1535 = vmul.f32 %v1497, 0.03125
      %v1536 = vmul.f32 %v1499, 0.03125
      %v1537 = vmul.f32 %v1501, 0.03125
      %v1538 = vmul.f32 %v1503, 0.03125
      %v1539 = vmul.f32 %v1505, 0.03125
      %v1540 = vmul.f32 %v1507, 0.03125
      %v1541 = vmul.f32 %v1509, 0.03125
      %v1542 = vmul.f32 %v1510, %v1510
      %v1543 = vmul.f32 %v1511, %v1511
      %v1544 = vmul.f32 %v1512, %v1512
      %v1545 = vmul.f32 %v1513, %v1513
      %v1546 = vmul.f32 %v1514, %v1514
      %v1547 = vmul.f32 %v1515, %v1515
      %v1548 = vmul.f32 %v1516, %v1516
      %v1549 = vmul.f32 %v1517, %v1517
      %v1550 = vmul.f32 %v1518, %v1518
      %v1551 = vmul.f32 %v1519, %v1519
      %v1552 = vmul.f32 %v1520, %v1520
      %v1553 = vmul.f32 %v1521, %v1521
      %v1554 = vmul.f32 %v1522, %v1522
      %v1555 = vmul.f32 %v1523, %v1523
      %v1556 = vmul.f32 %v1524, %v1524
      %v1557 = vmul.f32 %v1525, %v1525
      %v1558 = vsub.f32 %v1526, %v1542
      %v1559 = vsub.f32 %v1527, %v1543
      %v1560 = vsub.f32 %v1528, %v1544
      %v1561 = vsub.f32 %v1529, %v1545
      %v1562 = vsub.f32 %v1530, %v1546
      %v1563 = vsub.f32 %v1531, %v1547
      %v1564 = vsub.f32 %v1532, %v1548
      %v1565 = vsub.f32 %v1533, %v1549
      %v1566 = vsub.f32 %v1534, %v1550
      %v1567 = vsub.f32 %v1535, %v1551
      %v1568 = vsub.f32 %v1536, %v1552
      %v1569 = vsub.f32 %v1537, %v1553
      %v1570 = vsub.f32 %v1538, %v1554
      %v1571 = vsub.f32 %v1539, %v1555
      %v1572 = vsub.f32 %v1540, %v1556
      %v1573 = vsub.f32 %v1541, %v1557
      %v1574 = vadd.f32 %v1558, 1e-05
      %v1575 = vadd.f32 %v1559, 1e-05
      %v1576 = vadd.f32 %v1560, 1e-05
      %v1577 = vadd.f32 %v1561, 1e-05
      %v1578 = vadd.f32 %v1562, 1e-05
      %v1579 = vadd.f32 %v1563, 1e-05
      %v1580 = vadd.f32 %v1564, 1e-05
      %v1581 = vadd.f32 %v1565, 1e-05
      %v1582 = vadd.f32 %v1566, 1e-05
      %v1583 = vadd.f32 %v1567, 1e-05
      %v1584 = vadd.f32 %v1568, 1e-05
      %v1585 = vadd.f32 %v1569, 1e-05
      %v1586 = vadd.f32 %v1570, 1e-05
      %v1587 = vadd.f32 %v1571, 1e-05
      %v1588 = vadd.f32 %v1572, 1e-05
      %v1589 = vadd.f32 %v1573, 1e-05
      %v1590 = vrsqrt.pop %v1574
      %v1591 = vmul.f32 %v1590, %v1574
      %v1592 = vmul.f32 %v1591, %v1590
      %v1593 = vmul.f32 0.5, %v1592
      %v1594 = vsub.f32 1.5, %v1593
      %v1595 = vmul.f32 %v1590, %v1594
      %vm1596 = vweird.f32 %v1574
      %vm1597 = vweird.f32 %v1590
      %vm1598 = vmor %vm1596, %vm1597
      %v1599 = vsel %vm1598, %v1590, %v1595
      %v1600 = vrsqrt.pop %v1575
      %v1601 = vmul.f32 %v1600, %v1575
      %v1602 = vmul.f32 %v1601, %v1600
      %v1603 = vmul.f32 0.5, %v1602
      %v1604 = vsub.f32 1.5, %v1603
      %v1605 = vmul.f32 %v1600, %v1604
      %vm1606 = vweird.f32 %v1575
      %vm1607 = vweird.f32 %v1600
      %vm1608 = vmor %vm1606, %vm1607
      %v1609 = vsel %vm1608, %v1600, %v1605
      %v1610 = vrsqrt.pop %v1576
      %v1611 = vmul.f32 %v1610, %v1576
      %v1612 = vmul.f32 %v1611, %v1610
      %v1613 = vmul.f32 0.5, %v1612
      %v1614 = vsub.f32 1.5, %v1613
      %v1615 = vmul.f32 %v1610, %v1614
      %vm1616 = vweird.f32 %v1576
      %vm1617 = vweird.f32 %v1610
      %vm1618 = vmor %vm1616, %vm1617
      %v1619 = vsel %vm1618, %v1610, %v1615
      %v1620 = vrsqrt.pop %v1577
      %v1621 = vmul.f32 %v1620, %v1577
      %v1622 = vmul.f32 %v1621, %v1620
      %v1623 = vmul.f32 0.5, %v1622
      %v1624 = vsub.f32 1.5, %v1623
      %v1625 = vmul.f32 %v1620, %v1624
      %vm1626 = vweird.f32 %v1577
      %vm1627 = vweird.f32 %v1620
      %vm1628 = vmor %vm1626, %vm1627
      %v1629 = vsel %vm1628, %v1620, %v1625
      %v1630 = vrsqrt.pop %v1578
      %v1631 = vmul.f32 %v1630, %v1578
      %v1632 = vmul.f32 %v1631, %v1630
      %v1633 = vmul.f32 0.5, %v1632
      %v1634 = vsub.f32 1.5, %v1633
      %v1635 = vmul.f32 %v1630, %v1634
      %vm1636 = vweird.f32 %v1578
      %vm1637 = vweird.f32 %v1630
      %vm1638 = vmor %vm1636, %vm1637
      %v1639 = vsel %vm1638, %v1630, %v1635
      %v1640 = vrsqrt.pop %v1579
      %v1641 = vmul.f32 %v1640, %v1579
      %v1642 = vmul.f32 %v1641, %v1640
      %v1643 = vmul.f32 0.5, %v1642
      %v1644 = vsub.f32 1.5, %v1643
      %v1645 = vmul.f32 %v1640, %v1644
      %vm1646 = vweird.f32 %v1579
      %vm1647 = vweird.f32 %v1640
      %vm1648 = vmor %vm1646, %vm1647
      %v1649 = vsel %vm1648, %v1640, %v1645
      %v1650 = vrsqrt.pop %v1580
      %v1651 = vmul.f32 %v1650, %v1580
      %v1652 = vmul.f32 %v1651, %v1650
      %v1653 = vmul.f32 0.5, %v1652
      %v1654 = vsub.f32 1.5, %v1653
      %v1655 = vmul.f32 %v1650, %v1654
      %vm1656 = vweird.f32 %v1580
      %vm1657 = vweird.f32 %v1650
      %vm1658 = vmor %vm1656, %vm1657
      %v1659 = vsel %vm1658, %v1650, %v1655
      %v1660 = vrsqrt.pop %v1581
      %v1661 = vmul.f32 %v1660, %v1581
      %v1662 = vmul.f32 %v1661, %v1660
      %v1663 = vmul.f32 0.5, %v1662
      %v1664 = vsub.f32 1.5, %v1663
      %v1665 = vmul.f32 %v1660, %v1664
      %vm1666 = vweird.f32 %v1581
      %vm1667 = vweird.f32 %v1660
      %vm1668 = vmor %vm1666, %vm1667
      %v1669 = vsel %vm1668, %v1660, %v1665
      %v1670 = vrsqrt.pop %v1582
      %v1671 = vmul.f32 %v1670, %v1582
      %v1672 = vmul.f32 %v1671, %v1670
      %v1673 = vmul.f32 0.5, %v1672
      %v1674 = vsub.f32 1.5, %v1673
      %v1675 = vmul.f32 %v1670, %v1674
      %vm1676 = vweird.f32 %v1582
      %vm1677 = vweird.f32 %v1670
      %vm1678 = vmor %vm1676, %vm1677
      %v1679 = vsel %vm1678, %v1670, %v1675
      %v1680 = vrsqrt.pop %v1583
      %v1681 = vmul.f32 %v1680, %v1583
      %v1682 = vmul.f32 %v1681, %v1680
      %v1683 = vmul.f32 0.5, %v1682
      %v1684 = vsub.f32 1.5, %v1683
      %v1685 = vmul.f32 %v1680, %v1684
      %vm1686 = vweird.f32 %v1583
      %vm1687 = vweird.f32 %v1680
      %vm1688 = vmor %vm1686, %vm1687
      %v1689 = vsel %vm1688, %v1680, %v1685
      %v1690 = vrsqrt.pop %v1584
      %v1691 = vmul.f32 %v1690, %v1584
      %v1692 = vmul.f32 %v1691, %v1690
      %v1693 = vmul.f32 0.5, %v1692
      %v1694 = vsub.f32 1.5, %v1693
      %v1695 = vmul.f32 %v1690, %v1694
      %vm1696 = vweird.f32 %v1584
      %vm1697 = vweird.f32 %v1690
      %vm1698 = vmor %vm1696, %vm1697
      %v1699 = vsel %vm1698, %v1690, %v1695
      %v1700 = vrsqrt.pop %v1585
      %v1701 = vmul.f32 %v1700, %v1585
      %v1702 = vmul.f32 %v1701, %v1700
      %v1703 = vmul.f32 0.5, %v1702
      %v1704 = vsub.f32 1.5, %v1703
      %v1705 = vmul.f32 %v1700, %v1704
      %vm1706 = vweird.f32 %v1585
      %vm1707 = vweird.f32 %v1700
      %vm1708 = vmor %vm1706, %vm1707
      %v1709 = vsel %vm1708, %v1700, %v1705
      %v1710 = vrsqrt.pop %v1586
      %v1711 = vmul.f32 %v1710, %v1586
      %v1712 = vmul.f32 %v1711, %v1710
      %v1713 = vmul.f32 0.5, %v1712
      %v1714 = vsub.f32 1.5, %v1713
      %v1715 = vmul.f32 %v1710, %v1714
      %vm1716 = vweird.f32 %v1586
      %vm1717 = vweird.f32 %v1710
      %vm1718 = vmor %vm1716, %vm1717
      %v1719 = vsel %vm1718, %v1710, %v1715
      %v1720 = vrsqrt.pop %v1587
      %v1721 = vmul.f32 %v1720, %v1587
      %v1722 = vmul.f32 %v1721, %v1720
      %v1723 = vmul.f32 0.5, %v1722
      %v1724 = vsub.f32 1.5, %v1723
      %v1725 = vmul.f32 %v1720, %v1724
      %vm1726 = vweird.f32 %v1587
      %vm1727 = vweird.f32 %v1720
      %vm1728 = vmor %vm1726, %vm1727
      %v1729 = vsel %vm1728, %v1720, %v1725
      %v1730 = vrsqrt.pop %v1588
      %v1731 = vmul.f32 %v1730, %v1588
      %v1732 = vmul.f32 %v1731, %v1730
      %v1733 = vmul.f32 0.5, %v1732
      %v1734 = vsub.f32 1.5, %v1733
      %v1735 = vmul.f32 %v1730, %v1734
      %vm1736 = vweird.f32 %v1588
      %vm1737 = vweird.f32 %v1730
      %vm1738 = vmor %vm1736, %vm1737
      %v1739 = vsel %vm1738, %v1730, %v1735
      %v1740 = vrsqrt.pop %v1589
      %v1741 = vmul.f32 %v1740, %v1589
      %v1742 = vmul.f32 %v1741, %v1740
      %v1743 = vmul.f32 0.5, %v1742
      %v1744 = vsub.f32 1.5, %v1743
      %v1745 = vmul.f32 %v1740, %v1744
      %vm1746 = vweird.f32 %v1589
      %vm1747 = vweird.f32 %v1740
      %vm1748 = vmor %vm1746, %vm1747
      %v1749 = vsel %vm1748, %v1740, %v1745
      %v1751 = vperm.slane %v1428, 0
      %v1753 = vmul.f32 %v1751, %v1599
      %v1754 = vmul.f32 %v1751, %v1609
      %v1755 = vmul.f32 %v1751, %v1619
      %v1756 = vmul.f32 %v1751, %v1629
      %v1757 = vmul.f32 %v1751, %v1639
      %v1758 = vmul.f32 %v1751, %v1649
      %v1759 = vmul.f32 %v1751, %v1659
      %v1760 = vmul.f32 %v1751, %v1669
      %v1761 = vmul.f32 %v1751, %v1679
      %v1762 = vmul.f32 %v1751, %v1689
      %v1763 = vmul.f32 %v1751, %v1699
      %v1764 = vmul.f32 %v1751, %v1709
      %v1765 = vmul.f32 %v1751, %v1719
      %v1766 = vmul.f32 %v1751, %v1729
      %v1767 = vmul.f32 %v1751, %v1739
      %v1768 = vmul.f32 %v1751, %v1749
      %v1769 = vsub.f32 %v1381, %v1510
      %v1770 = vsub.f32 %v1384, %v1511
      %v1771 = vsub.f32 %v1387, %v1512
      %v1772 = vsub.f32 %v1390, %v1513
      %v1773 = vsub.f32 %v1393, %v1514
      %v1774 = vsub.f32 %v1396, %v1515
      %v1775 = vsub.f32 %v1399, %v1516
      %v1776 = vsub.f32 %v1402, %v1517
      %v1777 = vsub.f32 %v1405, %v1518
      %v1778 = vsub.f32 %v1408, %v1519
      %v1779 = vsub.f32 %v1411, %v1520
      %v1780 = vsub.f32 %v1414, %v1521
      %v1781 = vsub.f32 %v1417, %v1522
      %v1782 = vsub.f32 %v1420, %v1523
      %v1783 = vsub.f32 %v1423, %v1524
      %v1784 = vsub.f32 %v1426, %v1525
      %v1785 = vmul.f32 %v1769, %v1753
      %v1786 = vmul.f32 %v1770, %v1754
      %v1787 = vmul.f32 %v1771, %v1755
      %v1788 = vmul.f32 %v1772, %v1756
      %v1789 = vmul.f32 %v1773, %v1757
      %v1790 = vmul.f32 %v1774, %v1758
      %v1791 = vmul.f32 %v1775, %v1759
      %v1792 = vmul.f32 %v1776, %v1760
      %v1793 = vmul.f32 %v1777, %v1761
      %v1794 = vmul.f32 %v1778, %v1762
      %v1795 = vmul.f32 %v1779, %v1763
      %v1796 = vmul.f32 %v1780, %v1764
      %v1797 = vmul.f32 %v1781, %v1765
      %v1798 = vmul.f32 %v1782, %v1766
      %v1799 = vmul.f32 %v1783, %v1767
      %v1800 = vmul.f32 %v1784, %v1768
      %v1802 = vperm.slane %v1429, 0
      %v1804 = vadd.f32 %v1785, %v1802
      %v1805 = vadd.f32 %v1786, %v1802
      %v1806 = vadd.f32 %v1787, %v1802
      %v1807 = vadd.f32 %v1788, %v1802
      %v1808 = vadd.f32 %v1789, %v1802
      %v1809 = vadd.f32 %v1790, %v1802
      %v1810 = vadd.f32 %v1791, %v1802
      %v1811 = vadd.f32 %v1792, %v1802
      %v1812 = vadd.f32 %v1793, %v1802
      %v1813 = vadd.f32 %v1794, %v1802
      %v1814 = vadd.f32 %v1795, %v1802
      %v1815 = vadd.f32 %v1796, %v1802
      %v1816 = vadd.f32 %v1797, %v1802
      %v1817 = vadd.f32 %v1798, %v1802
      %v1818 = vadd.f32 %v1799, %v1802
      %v1819 = vadd.f32 %v1800, %v1802
      %v1820 = vadd.f32 %v1804, %v1327
      %v1821 = vadd.f32 %v1805, %v1328
      %v1822 = vadd.f32 %v1806, %v1329
      %v1823 = vadd.f32 %v1807, %v1330
      %v1824 = vadd.f32 %v1808, %v1331
      %v1825 = vadd.f32 %v1809, %v1332
      %v1826 = vadd.f32 %v1810, %v1333
      %v1827 = vadd.f32 %v1811, %v1334
      %v1828 = vadd.f32 %v1812, %v1335
      %v1829 = vadd.f32 %v1813, %v1336
      %v1830 = vadd.f32 %v1814, %v1337
      %v1831 = vadd.f32 %v1815, %v1338
      %v1832 = vadd.f32 %v1816, %v1339
      %v1833 = vadd.f32 %v1817, %v1340
      %v1834 = vadd.f32 %v1818, %v1341
      %v1835 = vadd.f32 %v1819, %v1342
      %v1836 = vxor.u32 %v1820, 2147483648
      %v1837 = vxor.u32 %v1821, 2147483648
      %v1838 = vxor.u32 %v1822, 2147483648
      %v1839 = vxor.u32 %v1823, 2147483648
      %v1840 = vxor.u32 %v1824, 2147483648
      %v1841 = vxor.u32 %v1825, 2147483648
      %v1842 = vxor.u32 %v1826, 2147483648
      %v1843 = vxor.u32 %v1827, 2147483648
      %v1844 = vxor.u32 %v1828, 2147483648
      %v1845 = vxor.u32 %v1829, 2147483648
      %v1846 = vxor.u32 %v1830, 2147483648
      %v1847 = vxor.u32 %v1831, 2147483648
      %v1848 = vxor.u32 %v1832, 2147483648
      %v1849 = vxor.u32 %v1833, 2147483648
      %v1850 = vxor.u32 %v1834, 2147483648
      %v1851 = vxor.u32 %v1835, 2147483648
      %v1852 = vmul.f32 %v1836, 1.442695
      %v1853 = vpow.pop %v1852
      %v1854 = vmul.f32 %v1837, 1.442695
      %v1855 = vpow.pop %v1854
      %v1856 = vmul.f32 %v1838, 1.442695
      %v1857 = vpow.pop %v1856
      %v1858 = vmul.f32 %v1839, 1.442695
      %v1859 = vpow.pop %v1858
      %v1860 = vmul.f32 %v1840, 1.442695
      %v1861 = vpow.pop %v1860
      %v1862 = vmul.f32 %v1841, 1.442695
      %v1863 = vpow.pop %v1862
      %v1864 = vmul.f32 %v1842, 1.442695
      %v1865 = vpow.pop %v1864
      %v1866 = vmul.f32 %v1843, 1.442695
      %v1867 = vpow.pop %v1866
      %v1868 = vmul.f32 %v1844, 1.442695
      %v1869 = vpow.pop %v1868
      %v1870 = vmul.f32 %v1845, 1.442695
      %v1871 = vpow.pop %v1870
      %v1872 = vmul.f32 %v1846, 1.442695
      %v1873 = vpow.pop %v1872
      %v1874 = vmul.f32 %v1847, 1.442695
      %v1875 = vpow.pop %v1874
      %v1876 = vmul.f32 %v1848, 1.442695
      %v1877 = vpow.pop %v1876
      %v1878 = vmul.f32 %v1849, 1.442695
      %v1879 = vpow.pop %v1878
      %v1880 = vmul.f32 %v1850, 1.442695
      %v1881 = vpow.pop %v1880
      %v1882 = vmul.f32 %v1851, 1.442695
      %v1883 = vpow.pop %v1882
      %v1884 = vadd.f32 %v1853, 1.0
      %v1885 = vadd.f32 %v1855, 1.0
      %v1886 = vadd.f32 %v1857, 1.0
      %v1887 = vadd.f32 %v1859, 1.0
      %v1888 = vadd.f32 %v1861, 1.0
      %v1889 = vadd.f32 %v1863, 1.0
      %v1890 = vadd.f32 %v1865, 1.0
      %v1891 = vadd.f32 %v1867, 1.0
      %v1892 = vadd.f32 %v1869, 1.0
      %v1893 = vadd.f32 %v1871, 1.0
      %v1894 = vadd.f32 %v1873, 1.0
      %v1895 = vadd.f32 %v1875, 1.0
      %v1896 = vadd.f32 %v1877, 1.0
      %v1897 = vadd.f32 %v1879, 1.0
      %v1898 = vadd.f32 %v1881, 1.0
      %v1899 = vadd.f32 %v1883, 1.0
      %v1900 = vrcp.pop %v1884
      %v1901 = vmul.f32 %v1884, %v1900
      %v1902 = vsub.f32 1.0, %v1901
      %v1903 = vmul.f32 %v1900, %v1902
      %v1904 = vadd.f32 %v1900, %v1903
      %vm1905 = vweird.f32 %v1884
      %vm1906 = vweird.f32 %v1900
      %vm1907 = vmor %vm1905, %vm1906
      %v1908 = vsel %vm1907, %v1900, %v1904
      %v1909 = vand.u32 2147483647, %v1884
      %vm1910 = vcmp.eq.f32.partialorder %v1909, 8.507059e+37
      %v1911 = vand.u32 %v1884, 2147483648
      %v1912 = vor.u32 1.1754944e-38, %v1911
      %v1913 = vsel %vm1910, %v1912, %v1908
      %v1914 = vmul.f32 1.0, %v1913
      %v1915 = vrcp.pop %v1885
      %v1916 = vmul.f32 %v1885, %v1915
      %v1917 = vsub.f32 1.0, %v1916
      %v1918 = vmul.f32 %v1915, %v1917
      %v1919 = vadd.f32 %v1915, %v1918
      %vm1920 = vweird.f32 %v1885
      %vm1921 = vweird.f32 %v1915
      %vm1922 = vmor %vm1920, %vm1921
      %v1923 = vsel %vm1922, %v1915, %v1919
      %v1924 = vand.u32 2147483647, %v1885
      %vm1925 = vcmp.eq.f32.partialorder %v1924, 8.507059e+37
      %v1926 = vand.u32 %v1885, 2147483648
      %v1927 = vor.u32 1.1754944e-38, %v1926
      %v1928 = vsel %vm1925, %v1927, %v1923
      %v1929 = vmul.f32 1.0, %v1928
      %v1930 = vrcp.pop %v1886
      %v1931 = vmul.f32 %v1886, %v1930
      %v1932 = vsub.f32 1.0, %v1931
      %v1933 = vmul.f32 %v1930, %v1932
      %v1934 = vadd.f32 %v1930, %v1933
      %vm1935 = vweird.f32 %v1886
      %vm1936 = vweird.f32 %v1930
      %vm1937 = vmor %vm1935, %vm1936
      %v1938 = vsel %vm1937, %v1930, %v1934
      %v1939 = vand.u32 2147483647, %v1886
      %vm1940 = vcmp.eq.f32.partialorder %v1939, 8.507059e+37
      %v1941 = vand.u32 %v1886, 2147483648
      %v1942 = vor.u32 1.1754944e-38, %v1941
      %v1943 = vsel %vm1940, %v1942, %v1938
      %v1944 = vmul.f32 1.0, %v1943
      %v1945 = vrcp.pop %v1887
      %v1946 = vmul.f32 %v1887, %v1945
      %v1947 = vsub.f32 1.0, %v1946
      %v1948 = vmul.f32 %v1945, %v1947
      %v1949 = vadd.f32 %v1945, %v1948
      %vm1950 = vweird.f32 %v1887
      %vm1951 = vweird.f32 %v1945
      %vm1952 = vmor %vm1950, %vm1951
      %v1953 = vsel %vm1952, %v1945, %v1949
      %v1954 = vand.u32 2147483647, %v1887
      %vm1955 = vcmp.eq.f32.partialorder %v1954, 8.507059e+37
      %v1956 = vand.u32 %v1887, 2147483648
      %v1957 = vor.u32 1.1754944e-38, %v1956
      %v1958 = vsel %vm1955, %v1957, %v1953
      %v1959 = vmul.f32 1.0, %v1958
      %v1960 = vrcp.pop %v1888
      %v1961 = vmul.f32 %v1888, %v1960
      %v1962 = vsub.f32 1.0, %v1961
      %v1963 = vmul.f32 %v1960, %v1962
      %v1964 = vadd.f32 %v1960, %v1963
      %vm1965 = vweird.f32 %v1888
      %vm1966 = vweird.f32 %v1960
      %vm1967 = vmor %vm1965, %vm1966
      %v1968 = vsel %vm1967, %v1960, %v1964
      %v1969 = vand.u32 2147483647, %v1888
      %vm1970 = vcmp.eq.f32.partialorder %v1969, 8.507059e+37
      %v1971 = vand.u32 %v1888, 2147483648
      %v1972 = vor.u32 1.1754944e-38, %v1971
      %v1973 = vsel %vm1970, %v1972, %v1968
      %v1974 = vmul.f32 1.0, %v1973
      %v1975 = vrcp.pop %v1889
      %v1976 = vmul.f32 %v1889, %v1975
      %v1977 = vsub.f32 1.0, %v1976
      %v1978 = vmul.f32 %v1975, %v1977
      %v1979 = vadd.f32 %v1975, %v1978
      %vm1980 = vweird.f32 %v1889
      %vm1981 = vweird.f32 %v1975
      %vm1982 = vmor %vm1980, %vm1981
      %v1983 = vsel %vm1982, %v1975, %v1979
      %v1984 = vand.u32 2147483647, %v1889
      %vm1985 = vcmp.eq.f32.partialorder %v1984, 8.507059e+37
      %v1986 = vand.u32 %v1889, 2147483648
      %v1987 = vor.u32 1.1754944e-38, %v1986
      %v1988 = vsel %vm1985, %v1987, %v1983
      %v1989 = vmul.f32 1.0, %v1988
      %v1990 = vrcp.pop %v1890
      %v1991 = vmul.f32 %v1890, %v1990
      %v1992 = vsub.f32 1.0, %v1991
      %v1993 = vmul.f32 %v1990, %v1992
      %v1994 = vadd.f32 %v1990, %v1993
      %vm1995 = vweird.f32 %v1890
      %vm1996 = vweird.f32 %v1990
      %vm1997 = vmor %vm1995, %vm1996
      %v1998 = vsel %vm1997, %v1990, %v1994
      %v1999 = vand.u32 2147483647, %v1890
      %vm2000 = vcmp.eq.f32.partialorder %v1999, 8.507059e+37
      %v2001 = vand.u32 %v1890, 2147483648
      %v2002 = vor.u32 1.1754944e-38, %v2001
      %v2003 = vsel %vm2000, %v2002, %v1998
      %v2004 = vmul.f32 1.0, %v2003
      %v2005 = vrcp.pop %v1891
      %v2006 = vmul.f32 %v1891, %v2005
      %v2007 = vsub.f32 1.0, %v2006
      %v2008 = vmul.f32 %v2005, %v2007
      %v2009 = vadd.f32 %v2005, %v2008
      %vm2010 = vweird.f32 %v1891
      %vm2011 = vweird.f32 %v2005
      %vm2012 = vmor %vm2010, %vm2011
      %v2013 = vsel %vm2012, %v2005, %v2009
      %v2014 = vand.u32 2147483647, %v1891
      %vm2015 = vcmp.eq.f32.partialorder %v2014, 8.507059e+37
      %v2016 = vand.u32 %v1891, 2147483648
      %v2017 = vor.u32 1.1754944e-38, %v2016
      %v2018 = vsel %vm2015, %v2017, %v2013
      %v2019 = vmul.f32 1.0, %v2018
      %v2020 = vrcp.pop %v1892
      %v2021 = vmul.f32 %v1892, %v2020
      %v2022 = vsub.f32 1.0, %v2021
      %v2023 = vmul.f32 %v2020, %v2022
      %v2024 = vadd.f32 %v2020, %v2023
      %vm2025 = vweird.f32 %v1892
      %vm2026 = vweird.f32 %v2020
      %vm2027 = vmor %vm2025, %vm2026
      %v2028 = vsel %vm2027, %v2020, %v2024
      %v2029 = vand.u32 2147483647, %v1892
      %vm2030 = vcmp.eq.f32.partialorder %v2029, 8.507059e+37
      %v2031 = vand.u32 %v1892, 2147483648
      %v2032 = vor.u32 1.1754944e-38, %v2031
      %v2033 = vsel %vm2030, %v2032, %v2028
      %v2034 = vmul.f32 1.0, %v2033
      %v2035 = vrcp.pop %v1893
      %v2036 = vmul.f32 %v1893, %v2035
      %v2037 = vsub.f32 1.0, %v2036
      %v2038 = vmul.f32 %v2035, %v2037
      %v2039 = vadd.f32 %v2035, %v2038
      %vm2040 = vweird.f32 %v1893
      %vm2041 = vweird.f32 %v2035
      %vm2042 = vmor %vm2040, %vm2041
      %v2043 = vsel %vm2042, %v2035, %v2039
      %v2044 = vand.u32 2147483647, %v1893
      %vm2045 = vcmp.eq.f32.partialorder %v2044, 8.507059e+37
      %v2046 = vand.u32 %v1893, 2147483648
      %v2047 = vor.u32 1.1754944e-38, %v2046
      %v2048 = vsel %vm2045, %v2047, %v2043
      %v2049 = vmul.f32 1.0, %v2048
      %v2050 = vrcp.pop %v1894
      %v2051 = vmul.f32 %v1894, %v2050
      %v2052 = vsub.f32 1.0, %v2051
      %v2053 = vmul.f32 %v2050, %v2052
      %v2054 = vadd.f32 %v2050, %v2053
      %vm2055 = vweird.f32 %v1894
      %vm2056 = vweird.f32 %v2050
      %vm2057 = vmor %vm2055, %vm2056
      %v2058 = vsel %vm2057, %v2050, %v2054
      %v2059 = vand.u32 2147483647, %v1894
      %vm2060 = vcmp.eq.f32.partialorder %v2059, 8.507059e+37
      %v2061 = vand.u32 %v1894, 2147483648
      %v2062 = vor.u32 1.1754944e-38, %v2061
      %v2063 = vsel %vm2060, %v2062, %v2058
      %v2064 = vmul.f32 1.0, %v2063
      %v2065 = vrcp.pop %v1895
      %v2066 = vmul.f32 %v1895, %v2065
      %v2067 = vsub.f32 1.0, %v2066
      %v2068 = vmul.f32 %v2065, %v2067
      %v2069 = vadd.f32 %v2065, %v2068
      %vm2070 = vweird.f32 %v1895
      %vm2071 = vweird.f32 %v2065
      %vm2072 = vmor %vm2070, %vm2071
      %v2073 = vsel %vm2072, %v2065, %v2069
      %v2074 = vand.u32 2147483647, %v1895
      %vm2075 = vcmp.eq.f32.partialorder %v2074, 8.507059e+37
      %v2076 = vand.u32 %v1895, 2147483648
      %v2077 = vor.u32 1.1754944e-38, %v2076
      %v2078 = vsel %vm2075, %v2077, %v2073
      %v2079 = vmul.f32 1.0, %v2078
      %v2080 = vrcp.pop %v1896
      %v2081 = vmul.f32 %v1896, %v2080
      %v2082 = vsub.f32 1.0, %v2081
      %v2083 = vmul.f32 %v2080, %v2082
      %v2084 = vadd.f32 %v2080, %v2083
      %vm2085 = vweird.f32 %v1896
      %vm2086 = vweird.f32 %v2080
      %vm2087 = vmor %vm2085, %vm2086
      %v2088 = vsel %vm2087, %v2080, %v2084
      %v2089 = vand.u32 2147483647, %v1896
      %vm2090 = vcmp.eq.f32.partialorder %v2089, 8.507059e+37
      %v2091 = vand.u32 %v1896, 2147483648
      %v2092 = vor.u32 1.1754944e-38, %v2091
      %v2093 = vsel %vm2090, %v2092, %v2088
      %v2094 = vmul.f32 1.0, %v2093
      %v2095 = vrcp.pop %v1897
      %v2096 = vmul.f32 %v1897, %v2095
      %v2097 = vsub.f32 1.0, %v2096
      %v2098 = vmul.f32 %v2095, %v2097
      %v2099 = vadd.f32 %v2095, %v2098
      %vm2100 = vweird.f32 %v1897
      %vm2101 = vweird.f32 %v2095
      %vm2102 = vmor %vm2100, %vm2101
      %v2103 = vsel %vm2102, %v2095, %v2099
      %v2104 = vand.u32 2147483647, %v1897
      %vm2105 = vcmp.eq.f32.partialorder %v2104, 8.507059e+37
      %v2106 = vand.u32 %v1897, 2147483648
      %v2107 = vor.u32 1.1754944e-38, %v2106
      %v2108 = vsel %vm2105, %v2107, %v2103
      %v2109 = vmul.f32 1.0, %v2108
      %v2110 = vrcp.pop %v1898
      %v2111 = vmul.f32 %v1898, %v2110
      %v2112 = vsub.f32 1.0, %v2111
      %v2113 = vmul.f32 %v2110, %v2112
      %v2114 = vadd.f32 %v2110, %v2113
      %vm2115 = vweird.f32 %v1898
      %vm2116 = vweird.f32 %v2110
      %vm2117 = vmor %vm2115, %vm2116
      %v2118 = vsel %vm2117, %v2110, %v2114
      %v2119 = vand.u32 2147483647, %v1898
      %vm2120 = vcmp.eq.f32.partialorder %v2119, 8.507059e+37
      %v2121 = vand.u32 %v1898, 2147483648
      %v2122 = vor.u32 1.1754944e-38, %v2121
      %v2123 = vsel %vm2120, %v2122, %v2118
      %v2124 = vmul.f32 1.0, %v2123
      %v2125 = vrcp.pop %v1899
      %v2126 = vmul.f32 %v1899, %v2125
      %v2127 = vsub.f32 1.0, %v2126
      %v2128 = vmul.f32 %v2125, %v2127
      %v2129 = vadd.f32 %v2125, %v2128
      %vm2130 = vweird.f32 %v1899
      %vm2131 = vweird.f32 %v2125
      %vm2132 = vmor %vm2130, %vm2131
      %v2133 = vsel %vm2132, %v2125, %v2129
      %v2134 = vand.u32 2147483647, %v1899
      %vm2135 = vcmp.eq.f32.partialorder %v2134, 8.507059e+37
      %v2136 = vand.u32 %v1899, 2147483648
      %v2137 = vor.u32 1.1754944e-38, %v2136
      %v2138 = vsel %vm2135, %v2137, %v2133
      %v2139 = vmul.f32 1.0, %v2138
      %v2140 = vmul.f32 %v1820, %v1914
      %v2141 = vmul.f32 %v1821, %v1929
      %v2142 = vmul.f32 %v1822, %v1944
      %v2143 = vmul.f32 %v1823, %v1959
      %v2144 = vmul.f32 %v1824, %v1974
      %v2145 = vmul.f32 %v1825, %v1989
      %v2146 = vmul.f32 %v1826, %v2004
      %v2147 = vmul.f32 %v1827, %v2019
      %v2148 = vmul.f32 %v1828, %v2034
      %v2149 = vmul.f32 %v1829, %v2049
      %v2150 = vmul.f32 %v1830, %v2064
      %v2151 = vmul.f32 %v1831, %v2079
      %v2152 = vmul.f32 %v1832, %v2094
      %v2153 = vmul.f32 %v1833, %v2109
      %v2154 = vmul.f32 %v1834, %v2124
      %v2155 = vmul.f32 %v1835, %v2139
      %v2156 = vld [vmem:[%s9] sm:$0xff]
      %v2157 = vld [vmem:[%s9 + $0x8] sm:$0xff]
      %v2158 = vld [vmem:[%s9 + $0x10] sm:$0xff]
      %v2159 = vld [vmem:[%s9 + $0x18] sm:$0xff]
      %v2160 = vld [vmem:[%s9 + $0x20] sm:$0xff]
      %v2161 = vld [vmem:[%s9 + $0x28] sm:$0xff]
      %v2162 = vld [vmem:[%s9 + $0x30] sm:$0xff]
      %v2163 = vld [vmem:[%s9 + $0x38] sm:$0xff]
      %v2164 = vld [vmem:[%s9 + $0x40] sm:$0xff]
      %v2165 = vld [vmem:[%s9 + $0x48] sm:$0xff]
      %v2166 = vld [vmem:[%s9 + $0x50] sm:$0xff]
      %v2167 = vld [vmem:[%s9 + $0x58] sm:$0xff]
      %v2168 = vld [vmem:[%s9 + $0x60] sm:$0xff]
      %v2169 = vld [vmem:[%s9 + $0x68] sm:$0xff]
      %v2170 = vld [vmem:[%s9 + $0x70] sm:$0xff]
      %v2171 = vld [vmem:[%s9 + $0x78] sm:$0xff]
      %v2172 = vld [vmem:[%s10] sm:$0x1]
      %v2174 = vperm.slane %v2172, 0
      %2176 = vmatpush.msra.mxu0 %v2171
      %2177 = vmatpush.msra.mxu0 %v2170
      %2178 = vmatpush.msra.mxu0 %v2169
      %2179 = vmatpush.msra.mxu0 %v2168
      %2180 = vmatpush.msra.mxu0 %v2167
      %2181 = vmatpush.msra.mxu0 %v2166
      %2182 = vmatpush.msra.mxu0 %v2165
      %2183 = vmatpush.msra.mxu0 %v2164
      %2184 = vmatpush.msra.mxu0 %v2163
      %2185 = vmatpush.msra.mxu0 %v2162
      %2186 = vmatpush.msra.mxu0 %v2161
      %2187 = vmatpush.msra.mxu0 %v2160
      %2188 = vmatpush.msra.mxu0 %v2159
      %2189 = vmatpush.msra.mxu0 %v2158
      %2190 = vmatpush.msra.mxu0 %v2157
      %2191 = vmatpush.msra.mxu0 %v2156
      %2192 = vmatmul.f32.gmra.mxu0 %v2140
      %v2193 = vpop.f32.mrf.mxu0
      %v2194 = vadd.f32 %v2174, %v2193
      %2195 = vmatmul.f32.gmra.mxu0 %v2141
      %v2196 = vpop.f32.mrf.mxu0
      %v2197 = vadd.f32 %v2174, %v2196
      %2198 = vmatmul.f32.gmra.mxu0 %v2142
      %v2199 = vpop.f32.mrf.mxu0
      %v2200 = vadd.f32 %v2174, %v2199
      %2201 = vmatmul.f32.gmra.mxu0 %v2143
      %v2202 = vpop.f32.mrf.mxu0
      %v2203 = vadd.f32 %v2174, %v2202
      %2204 = vmatmul.f32.gmra.mxu0 %v2144
      %v2205 = vpop.f32.mrf.mxu0
      %v2206 = vadd.f32 %v2174, %v2205
      %2207 = vmatmul.f32.gmra.mxu0 %v2145
      %v2208 = vpop.f32.mrf.mxu0
      %v2209 = vadd.f32 %v2174, %v2208
      %2210 = vmatmul.f32.gmra.mxu0 %v2146
      %v2211 = vpop.f32.mrf.mxu0
      %v2212 = vadd.f32 %v2174, %v2211
      %2213 = vmatmul.f32.gmra.mxu0 %v2147
      %v2214 = vpop.f32.mrf.mxu0
      %v2215 = vadd.f32 %v2174, %v2214
      %2216 = vmatmul.f32.gmra.mxu0 %v2148
      %v2217 = vpop.f32.mrf.mxu0
      %v2218 = vadd.f32 %v2174, %v2217
      %2219 = vmatmul.f32.gmra.mxu0 %v2149
      %v2220 = vpop.f32.mrf.mxu0
      %v2221 = vadd.f32 %v2174, %v2220
      %2222 = vmatmul.f32.gmra.mxu0 %v2150
      %v2223 = vpop.f32.mrf.mxu0
      %v2224 = vadd.f32 %v2174, %v2223
      %2225 = vmatmul.f32.gmra.mxu0 %v2151
      %v2226 = vpop.f32.mrf.mxu0
      %v2227 = vadd.f32 %v2174, %v2226
      %2228 = vmatmul.f32.gmra.mxu0 %v2152
      %v2229 = vpop.f32.mrf.mxu0
      %v2230 = vadd.f32 %v2174, %v2229
      %2231 = vmatmul.f32.gmra.mxu0 %v2153
      %v2232 = vpop.f32.mrf.mxu0
      %v2233 = vadd.f32 %v2174, %v2232
      %2234 = vmatmul.f32.gmra.mxu0 %v2154
      %v2235 = vpop.f32.mrf.mxu0
      %v2236 = vadd.f32 %v2174, %v2235
      %2237 = vmatmul.f32.gmra.mxu0 %v2155
      %v2238 = vpop.f32.mrf.mxu0
      %v2239 = vadd.f32 %v2174, %v2238
      %2240 = vdwg.mxu0
      %vm2241 = vcmask 23552
      %2242 = vst.msk [vmem:[%s388] sm:$0xff] %vm2241, %v2194
      %2243 = vst.msk [vmem:[%s388 + $0x8] sm:$0xff] %vm2241, %v2197
      %2244 = vst.msk [vmem:[%s388 + $0x10] sm:$0xff] %vm2241, %v2200
      %2245 = vst.msk [vmem:[%s388 + $0x18] sm:$0xff] %vm2241, %v2203
      %2246 = vst.msk [vmem:[%s388 + $0x20] sm:$0xff] %vm2241, %v2206
      %2247 = vst.msk [vmem:[%s388 + $0x28] sm:$0xff] %vm2241, %v2209
      %2248 = vst.msk [vmem:[%s388 + $0x30] sm:$0xff] %vm2241, %v2212
      %2249 = vst.msk [vmem:[%s388 + $0x38] sm:$0xff] %vm2241, %v2215
      %2250 = vst.msk [vmem:[%s388 + $0x40] sm:$0xff] %vm2241, %v2218
      %2251 = vst.msk [vmem:[%s388 + $0x48] sm:$0xff] %vm2241, %v2221
      %2252 = vst.msk [vmem:[%s388 + $0x50] sm:$0xff] %vm2241, %v2224
      %2253 = vst.msk [vmem:[%s388 + $0x58] sm:$0xff] %vm2241, %v2227
      %2254 = vst.msk [vmem:[%s388 + $0x60] sm:$0xff] %vm2241, %v2230
      %2255 = vst.msk [vmem:[%s388 + $0x68] sm:$0xff] %vm2241, %v2233
      %2256 = vst.msk [vmem:[%s388 + $0x70] sm:$0xff] %vm2241, %v2236
      %2257 = vst.msk [vmem:[%s388 + $0x78] sm:$0xff] %vm2241, %v2239
      %s2258 = smul.u32 16, %s22
      %p2259 = scmp.lt.s32.totalorder %s2258, 31
      %s2260 = scalar_select %p2259, %s2258, 31
      %s2261 = smul.addr %s2260, 8
      %s2262 = scalar_lea.vmem %s11, %s2261
      // Predicated region
      $region65: #{tpu_custom_call.1} parent=63 // pred_check
        %p2263 = pneg %p276
      $region66: #{tpu_custom_call.1} parent=63 // pred_check_branch
        %2265 = sbr.rel (%p2263) target = $region68
      $region67: #{tpu_custom_call.1} parent=63 // pred_region
        %s2266 = smul.u32 16, %s22
      $region68: #{tpu_custom_call.1} parent=63 // pred_fallthru
        _
    $region64: #{tpu_custom_call.1} parent=5 // pred_fallthru
      _
    %p2267 = scmp.le.s32.totalorder 2, %s17
    // Predicated region
    $region69: #{tpu_custom_call.1} parent=5 // pred_check
      %p2268 = pneg %p2267
    $region70: #{tpu_custom_call.1} parent=5 // pred_check_branch
      %2270 = sbr.rel (%p2268) target = $region72
    $region71: #{tpu_custom_call.1} parent=5 // pred_region
      %s2271 = ssub.s32 %s17, 2
      // Predicated region
      $region73: #{tpu_custom_call.1} parent=71 // pred_check
        %p2272 = pneg %p282
      $region74: #{tpu_custom_call.1} parent=71 // pred_check_branch
        %2274 = sbr.rel (%p2272) target = $region76
      $region75: #{tpu_custom_call.1} parent=71 // pred_region
        %s2275 = smul.u32 16, %s23
        %p2276 = scmp.lt.s32.totalorder %s2275, 31
        %s2277 = scalar_select %p2276, %s2275, 31
        %s2278 = smul.addr %s2277, 8
        %s2279 = scalar_lea.vmem %s11, %s2278
      $region76: #{tpu_custom_call.1} parent=71 // pred_fallthru
        _
    $region72: #{tpu_custom_call.1} parent=5 // pred_fallthru
      _
  $region6: #{tpu_custom_call.1} parent=0 // loop_footer
    %s21 = sadd.s32 1, %s17
  $region7: #{tpu_custom_call.1} parent=0 // loop_footer_branch
    %16 = sbr.rel target = $region3
  $region8: #{tpu_custom_call.1} parent=0 // loop_exit
    _

</llo_original>
